<compile_context>
chip_gen: v5e
topology: v5e:2x2
jax: 0.10.0
libtpu: 0.0.40
codegen_flags: <defaults>
</compile_context>

<pallas_src>
import math

import jax
import jax.numpy as jnp
from jax.experimental import pallas as pl
from jax.experimental.pallas import tpu as pltpu

HIDDEN = 128
LN_EPS = 1e-5

_GELU_C1 = math.sqrt(2.0 / math.pi)
_GELU_C2 = math.sqrt(2.0 / math.pi) * 0.044715


def _gelu(x):
    # tanh-approx GELU, constants pre-folded (no f32 FMA on the VPU, so fewer
    # separate mul/add instructions).  tanh goes to the EUP slot (free-ish).
    x2 = x * x
    inner = x * (_GELU_C1 + _GELU_C2 * x2)
    return (0.5 * x) * (1.0 + jnp.tanh(inner))


def distance_head_kernel(xa_ref, w1a_ref, s_ref, c_ref, o_ref):
    # xa_ref : (heads+1, tile_e)  edges on lanes; last "head" is constant 1.0
    # w1a_ref: (128, heads+1)     [W1^T | b1]  (bias folded into the matmul)
    # s_ref  : (2, 128)           row0 = ones, row1 = centered gamma*w2
    # c_ref  : (1,) in SMEM       sum(beta*w2) + out_proj.bias
    # o_ref  : (1, tile_e)        lane-dense score row
    xa = xa_ref[...]

    # dense (+bias): h[hidden, edge] = [W1^T | b1] @ [x^T ; 1]
    h = jnp.dot(w1a_ref[...], xa,
                preferred_element_type=jnp.float32,
                precision=jax.lax.Precision.HIGHEST)          # (128, tile_e)

    # activation
    h = _gelu(h)

    # LayerNorm stats + fused (LN-affine @ out_proj) on the MXU:
    #   red[0] = sum_h, red[1] = sum((gw2 - mean(gw2)) * h)
    S = s_ref[...]                                            # (2, 128)
    red = jnp.dot(S, h,
                  preferred_element_type=jnp.float32,
                  precision=jax.lax.Precision.HIGHEST)        # (2, tile_e)
    sum_h2 = jnp.dot(S[0:1, :], h * h,
                     preferred_element_type=jnp.float32,
                     precision=jax.lax.Precision.HIGHEST)     # (1, tile_e)

    inv_n = 1.0 / HIDDEN
    mean = red[0:1, :] * inv_n                                # (1, tile_e)
    var = sum_h2 * inv_n - mean * mean                        # one-pass variance
    inv = jax.lax.rsqrt(var + LN_EPS)
    num = red[1:2, :]                                         # centered contraction

    o_ref[...] = (num * inv + c_ref[0]).astype(o_ref.dtype)


def pack_distance_head_params(w1, b1, gamma, beta, w2_row, b2):
    """One-time param packing (outside the hot path).

    w1: (heads, 128) [in, out]; b1/gamma/beta/w2_row: (1, 128); b2: (1, 1).
    """
    w1 = jnp.asarray(w1, jnp.float32)
    b1 = jnp.asarray(b1, jnp.float32).reshape(HIDDEN, 1)
    gamma = jnp.asarray(gamma, jnp.float32).reshape(1, HIDDEN)
    beta = jnp.asarray(beta, jnp.float32).reshape(1, HIDDEN)
    w2 = jnp.asarray(w2_row, jnp.float32).reshape(1, HIDDEN)
    b2 = jnp.asarray(b2, jnp.float32).reshape(())

    # [W1^T | b1] consumed against [x^T ; ones] (bias folded into the matmul).
    w1a = jnp.concatenate([w1.T, b1], axis=1)                  # (128, heads+1)

    # Fused LN-affine + out_proj, mean-centered so the kernel needs no
    # separate "- mean * sum(gw2)" fixup:
    #   out = rsqrt(var+eps) * dot(gw2 - mean(gw2), h) + (sum(beta*w2) + b2)
    gw2 = gamma * w2                                           # (1, 128)
    gw2_c = gw2 - jnp.mean(gw2)
    S = jnp.concatenate([jnp.ones((1, HIDDEN), jnp.float32), gw2_c], axis=0)  # (2,128)

    c = (jnp.sum(beta * w2) + b2).reshape(1)                   # (1,) SMEM scalar
    return w1a, S, c


def distance_head_pallas(dist, packed_params, tile_e=1024):
    """dist: [E, heads] -> [E, 1] edge scores (pre-to_undirected).

    tile_e: sweep 512-1024 on v5e (single vst slot), 1024-2048 on v6e/v7x.
    """
    w1a, S, c = packed_params
    E, H = dist.shape
    assert tile_e % 128 == 0, "tile_e must be a multiple of 128 (lane width)"

    e_full = ((E + 127) // 128) * 128
    tile_e = max(128, min(tile_e, e_full))
    # v7x guard: keep >=2 grid steps (the "parallel" axis shards across its two
    # TensorCores) whenever there is enough work to be worth the split.
    if tile_e >= e_full and e_full >= 512:
        tile_e = ((e_full // 2 + 127) // 128) * 128
    num_tiles = pl.cdiv(e_full, tile_e)
    e_pad = num_tiles * tile_e

    # Edges on lanes, heads on sublanes; append the constant "ones head" that
    # carries the dense bias through the matmul.  (If dist can be bf16
    # upstream, pass it through unchanged: halves DMA bytes, LN math stays f32.)
    xTa = jnp.concatenate([dist.T, jnp.ones((1, E), dist.dtype)], axis=0)  # (H+1, E)

    out = pl.pallas_call(
        distance_head_kernel,
        out_shape=jax.ShapeDtypeStruct((1, e_pad), jnp.float32),
        grid=(num_tiles,),
        in_specs=[
            pl.BlockSpec((H + 1, tile_e), lambda i: (0, i)),     # [x^T ; 1] tile
            pl.BlockSpec((HIDDEN, H + 1), lambda i: (0, 0)),     # [W1^T | b1]
            pl.BlockSpec((2, HIDDEN), lambda i: (0, 0)),         # [ones ; gw2_c]
            pl.BlockSpec(memory_space=pltpu.MemorySpace.SMEM),   # scalar c
        ],
        out_specs=pl.BlockSpec((1, tile_e), lambda i: (0, i)),   # lane-dense row
        compiler_params=pltpu.CompilerParams(dimension_semantics=("parallel",)),
    )(xTa, w1a, S, c)
    # Ragged tail lanes hold garbage LN results; sliced away here (benign).
    return out[0, :E].reshape(E, 1)


def to_undirected_mean(edge_index, edge_attr, num_nodes=None):
    """torch_geometric.utils.to_undirected(reduce='mean') in eager JAX.

    Symmetrize, then coalesce duplicate (row, col) pairs by averaging attrs.
    Dynamic-shape; runs eagerly, not inside jit.
    """
    row = jnp.concatenate([edge_index[0], edge_index[1]])
    col = jnp.concatenate([edge_index[1], edge_index[0]])
    attr = jnp.concatenate([edge_attr, edge_attr], axis=0)

    pairs = jnp.stack([row, col], axis=1)                        # (2E, 2)
    uniq, inv = jnp.unique(pairs, axis=0, return_inverse=True)   # lex-sorted
    inv = inv.reshape(-1)
    n = int(uniq.shape[0])

    sums = jax.ops.segment_sum(attr, inv, num_segments=n)
    counts = jax.ops.segment_sum(jnp.ones((attr.shape[0], 1), attr.dtype), inv,
                                 num_segments=n)
    mean = sums / counts

    new_edge_index = uniq.T.astype(edge_index.dtype)             # (2, n)
    return new_edge_index, mean


def distance_head_forward(dist, edge_index, packed_params, num_nodes):
    scores = distance_head_pallas(dist, packed_params)           # [E, 1] (Pallas)
    new_edge_index, scores_u = to_undirected_mean(edge_index, scores, num_nodes)
    return scores_u.squeeze(), new_edge_index                    # ([E'], [2, E'])


def _reference_head(dist, params):
    """Pure-jnp reference of the un-fused head (sanity check for the kernel)."""
    w1, b1, gamma, beta, w2_row, b2 = params
    h = dist.astype(jnp.float32) @ w1 + b1
    h = _gelu(h)
    mean = jnp.mean(h, axis=-1, keepdims=True)
    var = jnp.mean(jnp.square(h - mean), axis=-1, keepdims=True)
    h = (h - mean) * jax.lax.rsqrt(var + LN_EPS)
    h = h * gamma + beta
    return jnp.sum(h * w2_row, axis=-1, keepdims=True) + b2


if __name__ == "__main__":
    key = jax.random.PRNGKey(0)
    heads = 8
    num_nodes = 16
    E = 48  # number of directed edges

    k_dist, k_src, k_dst, k_w1, k_b1, k_g, k_bt, k_w2, k_b2 = jax.random.split(key, 9)

    dist = jax.random.normal(k_dist, (E, heads), dtype=jnp.float32)
    src = jax.random.randint(k_src, (E,), 0, num_nodes, dtype=jnp.int32)
    dst = jax.random.randint(k_dst, (E,), 0, num_nodes, dtype=jnp.int32)
    edge_index = jnp.stack([src, dst])  # [2, E]

    # Deterministic parameter init (shapes from the module's __init__).
    w1 = 0.1 * jax.random.normal(k_w1, (heads, HIDDEN), dtype=jnp.float32)
    b1 = 0.1 * jax.random.normal(k_b1, (1, HIDDEN), dtype=jnp.float32)
    gamma = 1.0 + 0.05 * jax.random.normal(k_g, (1, HIDDEN), dtype=jnp.float32)
    beta = 0.05 * jax.random.normal(k_bt, (1, HIDDEN), dtype=jnp.float32)
    w2_row = 0.1 * jax.random.normal(k_w2, (1, HIDDEN), dtype=jnp.float32)  # out_proj.weight
    b2 = 0.1 * jax.random.normal(k_b2, (1, 1), dtype=jnp.float32)           # out_proj.bias
    params = (w1, b1, gamma, beta, w2_row, b2)
    packed = pack_distance_head_params(*params)

    # Check the Pallas-computed head against a pure-jnp (un-fused) reference.
    kernel_scores = jax.block_until_ready(distance_head_pallas(dist, packed))
    ref_scores = _reference_head(dist, params)
    assert jnp.allclose(kernel_scores, ref_scores, atol=1e-4, rtol=1e-4), "mismatch"

    # Full forward (Pallas head + to_undirected glue).
    out_dist, out_edge_index = distance_head_forward(dist, edge_index, packed, num_nodes)
    jax.block_until_ready(out_dist)
    jax.block_until_ready(out_edge_index)

    print("KERNEL_OK")
</pallas_src>

<mosaic_0001>
module attributes {stable_mosaic.version = 11 : i64} {
  func.func @distance_head_kernel(%arg0: i32, %arg1: memref<9x128xf32, #tpu.memory_space<vmem>>, %arg2: memref<128x9xf32, #tpu.memory_space<vmem>>, %arg3: memref<2x128xf32, #tpu.memory_space<vmem>>, %arg4: memref<1xf32, #tpu.memory_space<smem>>, %arg5: memref<1x128xf32, #tpu.memory_space<vmem>>) attributes {dimension_semantics = [#tpu.dimension_semantics<parallel>], iteration_bounds = array<i64: 1>, scalar_prefetch = 0 : i64, scratch_operands = 0 : i64, tpu.core_type = #tpu.core_type<tc>, window_params = [{transform_indices = @transform_0, window_bounds = array<i64: 9, 128>}, {pipeline_mode = #tpu.pipeline_mode<synchronous>, transform_indices = @transform_1, window_bounds = array<i64: 128, 9>}, {pipeline_mode = #tpu.pipeline_mode<synchronous>, transform_indices = @transform_2, window_bounds = array<i64: 2, 128>}, {transform_indices = @transform_3, window_bounds = array<i64: 1>}, {transform_indices = @transform_4, window_bounds = array<i64: 1, 128>}]} {
    %c0 = arith.constant 0 : index
    %c0_0 = arith.constant 0 : index
    %0 = vector.load %arg1[%c0, %c0_0] : memref<9x128xf32, #tpu.memory_space<vmem>>, vector<9x128xf32>
    %c0_1 = arith.constant 0 : index
    %c0_2 = arith.constant 0 : index
    %1 = vector.load %arg2[%c0_1, %c0_2] : memref<128x9xf32, #tpu.memory_space<vmem>>, vector<128x9xf32>
    %cst = arith.constant dense<0.000000e+00> : vector<128x128xf32>
    %2 = tpu.matmul %1, %0, %cst {dimension_numbers = #tpu.dot_dimension_numbers<[1], [0], [0], [1], [0, 0, 1, 1], [], []>, precision = #tpu.contract_precision<fp32>} : vector<128x9xf32>, vector<9x128xf32>, vector<128x128xf32> -> vector<128x128xf32>
    %3 = arith.mulf %2, %2 : vector<128x128xf32>
    %cst_3 = arith.constant 0.0356774069 : f32
    %4 = vector.broadcast %cst_3 : f32 to vector<128x128xf32>
    %5 = arith.mulf %4, %3 : vector<128x128xf32>
    %cst_4 = arith.constant 0.797884583 : f32
    %6 = vector.broadcast %cst_4 : f32 to vector<128x128xf32>
    %7 = arith.addf %6, %5 : vector<128x128xf32>
    %8 = arith.mulf %2, %7 : vector<128x128xf32>
    %cst_5 = arith.constant 5.000000e-01 : f32
    %9 = vector.broadcast %cst_5 : f32 to vector<128x128xf32>
    %10 = arith.mulf %9, %2 : vector<128x128xf32>
    %11 = math.tanh %8 : vector<128x128xf32>
    %cst_6 = arith.constant 1.000000e+00 : f32
    %12 = vector.broadcast %cst_6 : f32 to vector<128x128xf32>
    %13 = arith.addf %12, %11 : vector<128x128xf32>
    %14 = arith.mulf %10, %13 : vector<128x128xf32>
    %c0_7 = arith.constant 0 : index
    %c0_8 = arith.constant 0 : index
    %15 = vector.load %arg3[%c0_7, %c0_8] : memref<2x128xf32, #tpu.memory_space<vmem>>, vector<2x128xf32>
    %cst_9 = arith.constant dense<0.000000e+00> : vector<2x128xf32>
    %16 = tpu.matmul %15, %14, %cst_9 {dimension_numbers = #tpu.dot_dimension_numbers<[1], [0], [0], [1], [0, 0, 1, 1], [], []>, precision = #tpu.contract_precision<fp32>} : vector<2x128xf32>, vector<128x128xf32>, vector<2x128xf32> -> vector<2x128xf32>
    %17 = vector.extract_strided_slice %15 {offsets = [0, 0], sizes = [1, 128], strides = [1, 1]} : vector<2x128xf32> to vector<1x128xf32>
    %18 = arith.mulf %14, %14 : vector<128x128xf32>
    %cst_10 = arith.constant dense<0.000000e+00> : vector<1x128xf32>
    %19 = tpu.matmul %17, %18, %cst_10 {dimension_numbers = #tpu.dot_dimension_numbers<[1], [0], [0], [1], [0, 0, 1, 1], [], []>, precision = #tpu.contract_precision<fp32>} : vector<1x128xf32>, vector<128x128xf32>, vector<1x128xf32> -> vector<1x128xf32>
    %20 = vector.extract_strided_slice %16 {offsets = [0, 0], sizes = [1, 128], strides = [1, 1]} : vector<2x128xf32> to vector<1x128xf32>
    %cst_11 = arith.constant 7.812500e-03 : f32
    %21 = vector.broadcast %cst_11 : f32 to vector<1x128xf32>
    %22 = arith.mulf %20, %21 : vector<1x128xf32>
    %cst_12 = arith.constant 7.812500e-03 : f32
    %23 = vector.broadcast %cst_12 : f32 to vector<1x128xf32>
    %24 = arith.mulf %19, %23 : vector<1x128xf32>
    %25 = arith.mulf %22, %22 : vector<1x128xf32>
    %26 = arith.subf %24, %25 : vector<1x128xf32>
    %cst_13 = arith.constant 9.99999974E-6 : f32
    %27 = vector.broadcast %cst_13 : f32 to vector<1x128xf32>
    %28 = arith.addf %26, %27 : vector<1x128xf32>
    %29 = math.rsqrt %28 : vector<1x128xf32>
    %30 = vector.extract_strided_slice %16 {offsets = [1, 0], sizes = [1, 128], strides = [1, 1]} : vector<2x128xf32> to vector<1x128xf32>
    %31 = arith.mulf %30, %29 : vector<1x128xf32>
    %c0_14 = arith.constant 0 : index
    %32 = memref.load %arg4[%c0_14] : memref<1xf32, #tpu.memory_space<smem>>
    %33 = vector.broadcast %32 : f32 to vector<1x128xf32>
    %34 = arith.addf %31, %33 : vector<1x128xf32>
    %c0_15 = arith.constant 0 : index
    %c0_16 = arith.constant 0 : index
    %35 = vector.load %arg5[%c0_15, %c0_16] : memref<1x128xf32, #tpu.memory_space<vmem>>, vector<1x128xf32>
    tpu.vector_store %arg5[%c0_15, %c0_16], %34 {strides = array<i32>} : memref<1x128xf32, #tpu.memory_space<vmem>>, vector<1x128xf32>,
    return
  }
  func.func @transform_0(%arg0: i32) -> (i32, i32) {
    %c0_i32 = arith.constant 0 : i32
    %c0_i32_0 = arith.constant 0 : i32
    return %c0_i32, %arg0 : i32, i32
  }
  func.func @transform_1(%arg0: i32) -> (i32, i32) {
    %c0_i32 = arith.constant 0 : i32
    %c0_i32_0 = arith.constant 0 : i32
    %c0_i32_1 = arith.constant 0 : i32
    return %c0_i32, %c0_i32_0 : i32, i32
  }
  func.func @transform_2(%arg0: i32) -> (i32, i32) {
    %c0_i32 = arith.constant 0 : i32
    %c0_i32_0 = arith.constant 0 : i32
    %c0_i32_1 = arith.constant 0 : i32
    return %c0_i32, %c0_i32_0 : i32, i32
  }
  func.func @transform_3(%arg0: i32) -> i32 {
    %c0_i32 = arith.constant 0 : i32
    %c0_i32_0 = arith.constant 0 : i32
    return %c0_i32 : i32
  }
  func.func @transform_4(%arg0: i32) -> (i32, i32) {
    %c0_i32 = arith.constant 0 : i32
    %c0_i32_0 = arith.constant 0 : i32
    return %c0_i32, %arg0 : i32, i32
  }
}

</mosaic_0001>

<llo_original>
// kernel: tpu_custom_call.1
$region0: #{tpu_custom_call.1}
  #allocation0 [shape = 'u32[]', space=smem, size = 0x4, offset = 0x4, fixed_abs, tag = 'smem constant byte address 0x4 - core index']
  #allocation1 [shape = 'u32[72,128]{1,0:T(1,128)}', space=vmem, size = 0x9000, scoped, tag = 'internal scratch']
  #allocation2 [shape = 'f32[1]{0:T(128)S(6)}', space=smem, size = 0x200, scoped, tag = 'scoped memory for tpu_custom_call.1']
  %s0 = inlined_call_operand.vmem [shape: f32[9,48], index: 0, kind: input, shape index: {}]
  %s1 = inlined_call_operand.vmem [shape: f32[128,9], index: 1, kind: input, shape index: {}]
  %s2 = inlined_call_operand.vmem [shape: f32[2,128], index: 2, kind: input, shape index: {}]
  %s3 = inlined_call_operand.<no memory space> [shape: f32[1], index: 3, kind: input, shape index: {}]
  %s4 = inlined_call_operand.hbm [shape: f32[1,128], index: 4, kind: output, shape index: {}]
  %s5 = sld [smem:[#allocation0]]
  $region26: #{tpu_custom_call.1} parent=0
    _
  %s7 = ssub.s32 1, %s5
  %s8 = scalar_select 0, %s7, %s5
  %9 = sst [smem:[#allocation2]] %s3
  $region1: #{tpu_custom_call.1} parent=0
    #allocation3 [shape = 'u8[512]{0}', space=vmem, size = 0x400, scoped, tag = 'output window, operand 0, single buffered']
    #allocation4 [shape = 's32[1]{0}', space=sflag, size = 0x4, scoped, tag = 'scoped memory for tpu_custom_call.1']
    %10 = vsyncpa [#allocation4], 0
    // Predicated region
    $region2: #{tpu_custom_call.1} parent=1 // pred_check
      _
    $region3: #{tpu_custom_call.1} parent=1 // pred_check_branch
      %12 = sbr.rel (0) target = $region5
    $region4: #{tpu_custom_call.1} parent=1 // pred_region
      _
    $region5: #{tpu_custom_call.1} parent=1 // pred_fallthru
      _
    // Predicated region
    $region6: #{tpu_custom_call.1} parent=1 // pred_check
      _
    $region7: #{tpu_custom_call.1} parent=1 // pred_check_branch
      %14 = sbr.rel (0) target = $region9
    $region8: #{tpu_custom_call.1} parent=1 // pred_region
      _
    $region9: #{tpu_custom_call.1} parent=1 // pred_fallthru
      _
    // Predicated region
    $region10: #{tpu_custom_call.1} parent=1 // pred_check
      _
    $region11: #{tpu_custom_call.1} parent=1 // pred_check_branch
      %16 = sbr.rel (0) target = $region13
    $region12: #{tpu_custom_call.1} parent=1 // pred_region
      _
    $region13: #{tpu_custom_call.1} parent=1 // pred_fallthru
      _
    // Predicated region
    $region14: #{tpu_custom_call.1} parent=1 // pred_check
      _
    $region15: #{tpu_custom_call.1} parent=1 // pred_check_branch
      %18 = sbr.rel (0) target = $region17
    $region16: #{tpu_custom_call.1} parent=1 // pred_region
      _
    $region17: #{tpu_custom_call.1} parent=1 // pred_fallthru
      _
    %v19 = vld [vmem:[%s0] sm:$0xff]
    %v20 = vld [vmem:[%s0 + $0x8] sm:$0x1]
    %v21 = vld [vmem:[%s1] sm:$0xff]
    %v22 = vld [vmem:[%s1 + $0x8] sm:$0xff]
    %v23 = vld [vmem:[%s1 + $0x10] sm:$0xff]
    %v24 = vld [vmem:[%s1 + $0x18] sm:$0xff]
    %v25 = vld [vmem:[%s1 + $0x20] sm:$0xff]
    %v26 = vld [vmem:[%s1 + $0x28] sm:$0xff]
    %v27 = vld [vmem:[%s1 + $0x30] sm:$0xff]
    %v28 = vld [vmem:[%s1 + $0x38] sm:$0xff]
    %v29 = vld [vmem:[%s1 + $0x40] sm:$0xff]
    %v30 = vld [vmem:[%s1 + $0x48] sm:$0xff]
    %v31 = vld [vmem:[%s1 + $0x50] sm:$0xff]
    %v32 = vld [vmem:[%s1 + $0x58] sm:$0xff]
    %v33 = vld [vmem:[%s1 + $0x60] sm:$0xff]
    %v34 = vld [vmem:[%s1 + $0x68] sm:$0xff]
    %v35 = vld [vmem:[%s1 + $0x70] sm:$0xff]
    %v36 = vld [vmem:[%s1 + $0x78] sm:$0xff]
    %vm37 = vcmask 72704
    %v39 = vsel %vm37, %v21, 0
    %v42 = vsel %vm37, %v22, 0
    %v45 = vsel %vm37, %v23, 0
    %v48 = vsel %vm37, %v24, 0
    %v51 = vsel %vm37, %v25, 0
    %v54 = vsel %vm37, %v26, 0
    %v57 = vsel %vm37, %v27, 0
    %v60 = vsel %vm37, %v28, 0
    %v63 = vsel %vm37, %v29, 0
    %v66 = vsel %vm37, %v30, 0
    %v69 = vsel %vm37, %v31, 0
    %v72 = vsel %vm37, %v32, 0
    %v75 = vsel %vm37, %v33, 0
    %v78 = vsel %vm37, %v34, 0
    %v81 = vsel %vm37, %v35, 0
    %v84 = vsel %vm37, %v36, 0
    %vm86 = vcmask 1040384
    %v88 = vsel %vm86, %v20, 0
    %90 = vmatpush.msra.mxu0 0.0
    %91 = vmatpush.msra.mxu0 0.0
    %92 = vmatpush.msra.mxu0 0.0
    %93 = vmatpush.msra.mxu0 0.0
    %94 = vmatpush.msra.mxu0 0.0
    %95 = vmatpush.msra.mxu0 0.0
    %96 = vmatpush.msra.mxu0 0.0
    %97 = vmatpush.msra.mxu0 0.0
    %98 = vmatpush.msra.mxu0 0.0
    %99 = vmatpush.msra.mxu0 0.0
    %100 = vmatpush.msra.mxu0 0.0
    %101 = vmatpush.msra.mxu0 0.0
    %102 = vmatpush.msra.mxu0 0.0
    %103 = vmatpush.msra.mxu0 0.0
    %v104 = vand.u32 %v88, 4294901760
    %105 = vmatpush.msra.mxu0 %v104
    %v106 = vand.u32 %v19, 4294901760
    %107 = vmatpush.msra.mxu0 %v106
    %v108 = vand.u32 %v39, 4294901760
    %v109 = vsub.f32 %v39, %v108
    %v110 = vand.u32 %v109, 4294901760
    %v111 = vsub.f32 %v109, %v110
    %v112 = vand.u32 %v111, 4294901760
    %113 = vmatmul.f32.gmra.mxu0 %v112
    %v114 = vpop.f32.mrf.mxu0
    %v115 = vadd.f32 0.0, %v114
    %v116 = vand.u32 %v42, 4294901760
    %v117 = vsub.f32 %v42, %v116
    %v118 = vand.u32 %v117, 4294901760
    %v119 = vsub.f32 %v117, %v118
    %v120 = vand.u32 %v119, 4294901760
    %121 = vmatmul.f32.gmra.mxu0 %v120
    %v122 = vpop.f32.mrf.mxu0
    %v123 = vadd.f32 0.0, %v122
    %v124 = vand.u32 %v45, 4294901760
    %v125 = vsub.f32 %v45, %v124
    %v126 = vand.u32 %v125, 4294901760
    %v127 = vsub.f32 %v125, %v126
    %v128 = vand.u32 %v127, 4294901760
    %129 = vmatmul.f32.gmra.mxu0 %v128
    %v130 = vpop.f32.mrf.mxu0
    %v131 = vadd.f32 0.0, %v130
    %v132 = vand.u32 %v48, 4294901760
    %v133 = vsub.f32 %v48, %v132
    %v134 = vand.u32 %v133, 4294901760
    %v135 = vsub.f32 %v133, %v134
    %v136 = vand.u32 %v135, 4294901760
    %137 = vmatmul.f32.gmra.mxu0 %v136
    %v138 = vpop.f32.mrf.mxu0
    %v139 = vadd.f32 0.0, %v138
    %v140 = vand.u32 %v51, 4294901760
    %v141 = vsub.f32 %v51, %v140
    %v142 = vand.u32 %v141, 4294901760
    %v143 = vsub.f32 %v141, %v142
    %v144 = vand.u32 %v143, 4294901760
    %145 = vmatmul.f32.gmra.mxu0 %v144
    %v146 = vpop.f32.mrf.mxu0
    %v147 = vadd.f32 0.0, %v146
    %v148 = vand.u32 %v54, 4294901760
    %v149 = vsub.f32 %v54, %v148
    %v150 = vand.u32 %v149, 4294901760
    %v151 = vsub.f32 %v149, %v150
    %v152 = vand.u32 %v151, 4294901760
    %153 = vmatmul.f32.gmra.mxu0 %v152
    %v154 = vpop.f32.mrf.mxu0
    %v155 = vadd.f32 0.0, %v154
    %v156 = vand.u32 %v57, 4294901760
    %v157 = vsub.f32 %v57, %v156
    %v158 = vand.u32 %v157, 4294901760
    %v159 = vsub.f32 %v157, %v158
    %v160 = vand.u32 %v159, 4294901760
    %161 = vmatmul.f32.gmra.mxu0 %v160
    %v162 = vpop.f32.mrf.mxu0
    %v163 = vadd.f32 0.0, %v162
    %v164 = vand.u32 %v60, 4294901760
    %v165 = vsub.f32 %v60, %v164
    %v166 = vand.u32 %v165, 4294901760
    %v167 = vsub.f32 %v165, %v166
    %v168 = vand.u32 %v167, 4294901760
    %169 = vmatmul.f32.gmra.mxu0 %v168
    %v170 = vpop.f32.mrf.mxu0
    %v171 = vadd.f32 0.0, %v170
    %v172 = vand.u32 %v63, 4294901760
    %v173 = vsub.f32 %v63, %v172
    %v174 = vand.u32 %v173, 4294901760
    %v175 = vsub.f32 %v173, %v174
    %v176 = vand.u32 %v175, 4294901760
    %177 = vmatmul.f32.gmra.mxu0 %v176
    %v178 = vpop.f32.mrf.mxu0
    %v179 = vadd.f32 0.0, %v178
    %v180 = vand.u32 %v66, 4294901760
    %v181 = vsub.f32 %v66, %v180
    %v182 = vand.u32 %v181, 4294901760
    %v183 = vsub.f32 %v181, %v182
    %v184 = vand.u32 %v183, 4294901760
    %185 = vmatmul.f32.gmra.mxu0 %v184
    %v186 = vpop.f32.mrf.mxu0
    %v187 = vadd.f32 0.0, %v186
    %v188 = vand.u32 %v69, 4294901760
    %v189 = vsub.f32 %v69, %v188
    %v190 = vand.u32 %v189, 4294901760
    %v191 = vsub.f32 %v189, %v190
    %v192 = vand.u32 %v191, 4294901760
    %193 = vmatmul.f32.gmra.mxu0 %v192
    %v194 = vpop.f32.mrf.mxu0
    %v195 = vadd.f32 0.0, %v194
    %v196 = vand.u32 %v72, 4294901760
    %v197 = vsub.f32 %v72, %v196
    %v198 = vand.u32 %v197, 4294901760
    %v199 = vsub.f32 %v197, %v198
    %v200 = vand.u32 %v199, 4294901760
    %201 = vmatmul.f32.gmra.mxu0 %v200
    %v202 = vpop.f32.mrf.mxu0
    %v203 = vadd.f32 0.0, %v202
    %v204 = vand.u32 %v75, 4294901760
    %v205 = vsub.f32 %v75, %v204
    %v206 = vand.u32 %v205, 4294901760
    %v207 = vsub.f32 %v205, %v206
    %v208 = vand.u32 %v207, 4294901760
    %209 = vmatmul.f32.gmra.mxu0 %v208
    %v210 = vpop.f32.mrf.mxu0
    %v211 = vadd.f32 0.0, %v210
    %v212 = vand.u32 %v78, 4294901760
    %v213 = vsub.f32 %v78, %v212
    %v214 = vand.u32 %v213, 4294901760
    %v215 = vsub.f32 %v213, %v214
    %v216 = vand.u32 %v215, 4294901760
    %217 = vmatmul.f32.gmra.mxu0 %v216
    %v218 = vpop.f32.mrf.mxu0
    %v219 = vadd.f32 0.0, %v218
    %v220 = vand.u32 %v81, 4294901760
    %v221 = vsub.f32 %v81, %v220
    %v222 = vand.u32 %v221, 4294901760
    %v223 = vsub.f32 %v221, %v222
    %v224 = vand.u32 %v223, 4294901760
    %225 = vmatmul.f32.gmra.mxu0 %v224
    %v226 = vpop.f32.mrf.mxu0
    %v227 = vadd.f32 0.0, %v226
    %v228 = vand.u32 %v84, 4294901760
    %v229 = vsub.f32 %v84, %v228
    %v230 = vand.u32 %v229, 4294901760
    %v231 = vsub.f32 %v229, %v230
    %v232 = vand.u32 %v231, 4294901760
    %233 = vmatmul.f32.gmra.mxu0 %v232
    %v234 = vpop.f32.mrf.mxu0
    %v235 = vadd.f32 0.0, %v234
    %236 = vdwg.mxu0
    %237 = vmatpush.msra.mxu0 0.0
    %238 = vmatpush.msra.mxu0 0.0
    %239 = vmatpush.msra.mxu0 0.0
    %240 = vmatpush.msra.mxu0 0.0
    %241 = vmatpush.msra.mxu0 0.0
    %242 = vmatpush.msra.mxu0 0.0
    %243 = vmatpush.msra.mxu0 0.0
    %244 = vmatpush.msra.mxu0 0.0
    %245 = vmatpush.msra.mxu0 0.0
    %246 = vmatpush.msra.mxu0 0.0
    %247 = vmatpush.msra.mxu0 0.0
    %248 = vmatpush.msra.mxu0 0.0
    %249 = vmatpush.msra.mxu0 0.0
    %250 = vmatpush.msra.mxu0 0.0
    %v251 = vand.u32 %v88, 4294901760
    %v252 = vsub.f32 %v88, %v251
    %v253 = vand.u32 %v252, 4294901760
    %v254 = vsub.f32 %v252, %v253
    %v255 = vand.u32 %v254, 4294901760
    %256 = vmatpush.msra.mxu0 %v255
    %v257 = vand.u32 %v19, 4294901760
    %v258 = vsub.f32 %v19, %v257
    %v259 = vand.u32 %v258, 4294901760
    %v260 = vsub.f32 %v258, %v259
    %v261 = vand.u32 %v260, 4294901760
    %262 = vmatpush.msra.mxu0 %v261
    %v263 = vand.u32 %v39, 4294901760
    %264 = vmatmul.f32.gmra.mxu0 %v263
    %v265 = vpop.f32.mrf.mxu0
    %v266 = vadd.f32 %v115, %v265
    %v267 = vand.u32 %v42, 4294901760
    %268 = vmatmul.f32.gmra.mxu0 %v267
    %v269 = vpop.f32.mrf.mxu0
    %v270 = vadd.f32 %v123, %v269
    %v271 = vand.u32 %v45, 4294901760
    %272 = vmatmul.f32.gmra.mxu0 %v271
    %v273 = vpop.f32.mrf.mxu0
    %v274 = vadd.f32 %v131, %v273
    %v275 = vand.u32 %v48, 4294901760
    %276 = vmatmul.f32.gmra.mxu0 %v275
    %v277 = vpop.f32.mrf.mxu0
    %v278 = vadd.f32 %v139, %v277
    %v279 = vand.u32 %v51, 4294901760
    %280 = vmatmul.f32.gmra.mxu0 %v279
    %v281 = vpop.f32.mrf.mxu0
    %v282 = vadd.f32 %v147, %v281
    %v283 = vand.u32 %v54, 4294901760
    %284 = vmatmul.f32.gmra.mxu0 %v283
    %v285 = vpop.f32.mrf.mxu0
    %v286 = vadd.f32 %v155, %v285
    %v287 = vand.u32 %v57, 4294901760
    %288 = vmatmul.f32.gmra.mxu0 %v287
    %v289 = vpop.f32.mrf.mxu0
    %v290 = vadd.f32 %v163, %v289
    %v291 = vand.u32 %v60, 4294901760
    %292 = vmatmul.f32.gmra.mxu0 %v291
    %v293 = vpop.f32.mrf.mxu0
    %v294 = vadd.f32 %v171, %v293
    %v295 = vand.u32 %v63, 4294901760
    %296 = vmatmul.f32.gmra.mxu0 %v295
    %v297 = vpop.f32.mrf.mxu0
    %v298 = vadd.f32 %v179, %v297
    %v299 = vand.u32 %v66, 4294901760
    %300 = vmatmul.f32.gmra.mxu0 %v299
    %v301 = vpop.f32.mrf.mxu0
    %v302 = vadd.f32 %v187, %v301
    %v303 = vand.u32 %v69, 4294901760
    %304 = vmatmul.f32.gmra.mxu0 %v303
    %v305 = vpop.f32.mrf.mxu0
    %v306 = vadd.f32 %v195, %v305
    %v307 = vand.u32 %v72, 4294901760
    %308 = vmatmul.f32.gmra.mxu0 %v307
    %v309 = vpop.f32.mrf.mxu0
    %v310 = vadd.f32 %v203, %v309
    %v311 = vand.u32 %v75, 4294901760
    %312 = vmatmul.f32.gmra.mxu0 %v311
    %v313 = vpop.f32.mrf.mxu0
    %v314 = vadd.f32 %v211, %v313
    %v315 = vand.u32 %v78, 4294901760
    %316 = vmatmul.f32.gmra.mxu0 %v315
    %v317 = vpop.f32.mrf.mxu0
    %v318 = vadd.f32 %v219, %v317
    %v319 = vand.u32 %v81, 4294901760
    %320 = vmatmul.f32.gmra.mxu0 %v319
    %v321 = vpop.f32.mrf.mxu0
    %v322 = vadd.f32 %v227, %v321
    %v323 = vand.u32 %v84, 4294901760
    %324 = vmatmul.f32.gmra.mxu0 %v323
    %v325 = vpop.f32.mrf.mxu0
    %v326 = vadd.f32 %v235, %v325
    %327 = vdwg.mxu0
    %328 = vmatpush.msra.mxu0 0.0
    %329 = vmatpush.msra.mxu0 0.0
    %330 = vmatpush.msra.mxu0 0.0
    %331 = vmatpush.msra.mxu0 0.0
    %332 = vmatpush.msra.mxu0 0.0
    %333 = vmatpush.msra.mxu0 0.0
    %334 = vmatpush.msra.mxu0 0.0
    %335 = vmatpush.msra.mxu0 0.0
    %336 = vmatpush.msra.mxu0 0.0
    %337 = vmatpush.msra.mxu0 0.0
    %338 = vmatpush.msra.mxu0 0.0
    %339 = vmatpush.msra.mxu0 0.0
    %340 = vmatpush.msra.mxu0 0.0
    %341 = vmatpush.msra.mxu0 0.0
    %v342 = vand.u32 %v88, 4294901760
    %v343 = vsub.f32 %v88, %v342
    %344 = vmatpush.msra.mxu0 %v343
    %v345 = vand.u32 %v19, 4294901760
    %v346 = vsub.f32 %v19, %v345
    %347 = vmatpush.msra.mxu0 %v346
    %v348 = vand.u32 %v39, 4294901760
    %v349 = vsub.f32 %v39, %v348
    %350 = vmatmul.f32.gmra.mxu0 %v349
    %v351 = vpop.f32.mrf.mxu0
    %v352 = vadd.f32 %v266, %v351
    %v353 = vand.u32 %v42, 4294901760
    %v354 = vsub.f32 %v42, %v353
    %355 = vmatmul.f32.gmra.mxu0 %v354
    %v356 = vpop.f32.mrf.mxu0
    %v357 = vadd.f32 %v270, %v356
    %v358 = vand.u32 %v45, 4294901760
    %v359 = vsub.f32 %v45, %v358
    %360 = vmatmul.f32.gmra.mxu0 %v359
    %v361 = vpop.f32.mrf.mxu0
    %v362 = vadd.f32 %v274, %v361
    %v363 = vand.u32 %v48, 4294901760
    %v364 = vsub.f32 %v48, %v363
    %365 = vmatmul.f32.gmra.mxu0 %v364
    %v366 = vpop.f32.mrf.mxu0
    %v367 = vadd.f32 %v278, %v366
    %v368 = vand.u32 %v51, 4294901760
    %v369 = vsub.f32 %v51, %v368
    %370 = vmatmul.f32.gmra.mxu0 %v369
    %v371 = vpop.f32.mrf.mxu0
    %v372 = vadd.f32 %v282, %v371
    %v373 = vand.u32 %v54, 4294901760
    %v374 = vsub.f32 %v54, %v373
    %375 = vmatmul.f32.gmra.mxu0 %v374
    %v376 = vpop.f32.mrf.mxu0
    %v377 = vadd.f32 %v286, %v376
    %v378 = vand.u32 %v57, 4294901760
    %v379 = vsub.f32 %v57, %v378
    %380 = vmatmul.f32.gmra.mxu0 %v379
    %v381 = vpop.f32.mrf.mxu0
    %v382 = vadd.f32 %v290, %v381
    %v383 = vand.u32 %v60, 4294901760
    %v384 = vsub.f32 %v60, %v383
    %385 = vmatmul.f32.gmra.mxu0 %v384
    %v386 = vpop.f32.mrf.mxu0
    %v387 = vadd.f32 %v294, %v386
    %v388 = vand.u32 %v63, 4294901760
    %v389 = vsub.f32 %v63, %v388
    %390 = vmatmul.f32.gmra.mxu0 %v389
    %v391 = vpop.f32.mrf.mxu0
    %v392 = vadd.f32 %v298, %v391
    %v393 = vand.u32 %v66, 4294901760
    %v394 = vsub.f32 %v66, %v393
    %395 = vmatmul.f32.gmra.mxu0 %v394
    %v396 = vpop.f32.mrf.mxu0
    %v397 = vadd.f32 %v302, %v396
    %v398 = vand.u32 %v69, 4294901760
    %v399 = vsub.f32 %v69, %v398
    %400 = vmatmul.f32.gmra.mxu0 %v399
    %v401 = vpop.f32.mrf.mxu0
    %v402 = vadd.f32 %v306, %v401
    %v403 = vand.u32 %v72, 4294901760
    %v404 = vsub.f32 %v72, %v403
    %405 = vmatmul.f32.gmra.mxu0 %v404
    %v406 = vpop.f32.mrf.mxu0
    %v407 = vadd.f32 %v310, %v406
    %v408 = vand.u32 %v75, 4294901760
    %v409 = vsub.f32 %v75, %v408
    %410 = vmatmul.f32.gmra.mxu0 %v409
    %v411 = vpop.f32.mrf.mxu0
    %v412 = vadd.f32 %v314, %v411
    %v413 = vand.u32 %v78, 4294901760
    %v414 = vsub.f32 %v78, %v413
    %415 = vmatmul.f32.gmra.mxu0 %v414
    %v416 = vpop.f32.mrf.mxu0
    %v417 = vadd.f32 %v318, %v416
    %v418 = vand.u32 %v81, 4294901760
    %v419 = vsub.f32 %v81, %v418
    %420 = vmatmul.f32.gmra.mxu0 %v419
    %v421 = vpop.f32.mrf.mxu0
    %v422 = vadd.f32 %v322, %v421
    %v423 = vand.u32 %v84, 4294901760
    %v424 = vsub.f32 %v84, %v423
    %425 = vmatmul.f32.gmra.mxu0 %v424
    %v426 = vpop.f32.mrf.mxu0
    %v427 = vadd.f32 %v326, %v426
    %428 = vdwg.mxu0
    %429 = vmatpush.msra.mxu0 0.0
    %430 = vmatpush.msra.mxu0 0.0
    %431 = vmatpush.msra.mxu0 0.0
    %432 = vmatpush.msra.mxu0 0.0
    %433 = vmatpush.msra.mxu0 0.0
    %434 = vmatpush.msra.mxu0 0.0
    %435 = vmatpush.msra.mxu0 0.0
    %436 = vmatpush.msra.mxu0 0.0
    %437 = vmatpush.msra.mxu0 0.0
    %438 = vmatpush.msra.mxu0 0.0
    %439 = vmatpush.msra.mxu0 0.0
    %440 = vmatpush.msra.mxu0 0.0
    %441 = vmatpush.msra.mxu0 0.0
    %442 = vmatpush.msra.mxu0 0.0
    %v443 = vand.u32 %v88, 4294901760
    %444 = vmatpush.msra.mxu0 %v443
    %v445 = vand.u32 %v19, 4294901760
    %446 = vmatpush.msra.mxu0 %v445
    %v447 = vand.u32 %v39, 4294901760
    %v448 = vsub.f32 %v39, %v447
    %v449 = vand.u32 %v448, 4294901760
    %450 = vmatmul.f32.gmra.mxu0 %v449
    %v451 = vpop.f32.mrf.mxu0
    %v452 = vadd.f32 %v352, %v451
    %v453 = vand.u32 %v42, 4294901760
    %v454 = vsub.f32 %v42, %v453
    %v455 = vand.u32 %v454, 4294901760
    %456 = vmatmul.f32.gmra.mxu0 %v455
    %v457 = vpop.f32.mrf.mxu0
    %v458 = vadd.f32 %v357, %v457
    %v459 = vand.u32 %v45, 4294901760
    %v460 = vsub.f32 %v45, %v459
    %v461 = vand.u32 %v460, 4294901760
    %462 = vmatmul.f32.gmra.mxu0 %v461
    %v463 = vpop.f32.mrf.mxu0
    %v464 = vadd.f32 %v362, %v463
    %v465 = vand.u32 %v48, 4294901760
    %v466 = vsub.f32 %v48, %v465
    %v467 = vand.u32 %v466, 4294901760
    %468 = vmatmul.f32.gmra.mxu0 %v467
    %v469 = vpop.f32.mrf.mxu0
    %v470 = vadd.f32 %v367, %v469
    %v471 = vand.u32 %v51, 4294901760
    %v472 = vsub.f32 %v51, %v471
    %v473 = vand.u32 %v472, 4294901760
    %474 = vmatmul.f32.gmra.mxu0 %v473
    %v475 = vpop.f32.mrf.mxu0
    %v476 = vadd.f32 %v372, %v475
    %v477 = vand.u32 %v54, 4294901760
    %v478 = vsub.f32 %v54, %v477
    %v479 = vand.u32 %v478, 4294901760
    %480 = vmatmul.f32.gmra.mxu0 %v479
    %v481 = vpop.f32.mrf.mxu0
    %v482 = vadd.f32 %v377, %v481
    %v483 = vand.u32 %v57, 4294901760
    %v484 = vsub.f32 %v57, %v483
    %v485 = vand.u32 %v484, 4294901760
    %486 = vmatmul.f32.gmra.mxu0 %v485
    %v487 = vpop.f32.mrf.mxu0
    %v488 = vadd.f32 %v382, %v487
    %v489 = vand.u32 %v60, 4294901760
    %v490 = vsub.f32 %v60, %v489
    %v491 = vand.u32 %v490, 4294901760
    %492 = vmatmul.f32.gmra.mxu0 %v491
    %v493 = vpop.f32.mrf.mxu0
    %v494 = vadd.f32 %v387, %v493
    %v495 = vand.u32 %v63, 4294901760
    %v496 = vsub.f32 %v63, %v495
    %v497 = vand.u32 %v496, 4294901760
    %498 = vmatmul.f32.gmra.mxu0 %v497
    %v499 = vpop.f32.mrf.mxu0
    %v500 = vadd.f32 %v392, %v499
    %v501 = vand.u32 %v66, 4294901760
    %v502 = vsub.f32 %v66, %v501
    %v503 = vand.u32 %v502, 4294901760
    %504 = vmatmul.f32.gmra.mxu0 %v503
    %v505 = vpop.f32.mrf.mxu0
    %v506 = vadd.f32 %v397, %v505
    %v507 = vand.u32 %v69, 4294901760
    %v508 = vsub.f32 %v69, %v507
    %v509 = vand.u32 %v508, 4294901760
    %510 = vmatmul.f32.gmra.mxu0 %v509
    %v511 = vpop.f32.mrf.mxu0
    %v512 = vadd.f32 %v402, %v511
    %v513 = vand.u32 %v72, 4294901760
    %v514 = vsub.f32 %v72, %v513
    %v515 = vand.u32 %v514, 4294901760
    %516 = vmatmul.f32.gmra.mxu0 %v515
    %v517 = vpop.f32.mrf.mxu0
    %v518 = vadd.f32 %v407, %v517
    %v519 = vand.u32 %v75, 4294901760
    %v520 = vsub.f32 %v75, %v519
    %v521 = vand.u32 %v520, 4294901760
    %522 = vmatmul.f32.gmra.mxu0 %v521
    %v523 = vpop.f32.mrf.mxu0
    %v524 = vadd.f32 %v412, %v523
    %v525 = vand.u32 %v78, 4294901760
    %v526 = vsub.f32 %v78, %v525
    %v527 = vand.u32 %v526, 4294901760
    %528 = vmatmul.f32.gmra.mxu0 %v527
    %v529 = vpop.f32.mrf.mxu0
    %v530 = vadd.f32 %v417, %v529
    %v531 = vand.u32 %v81, 4294901760
    %v532 = vsub.f32 %v81, %v531
    %v533 = vand.u32 %v532, 4294901760
    %534 = vmatmul.f32.gmra.mxu0 %v533
    %v535 = vpop.f32.mrf.mxu0
    %v536 = vadd.f32 %v422, %v535
    %v537 = vand.u32 %v84, 4294901760
    %v538 = vsub.f32 %v84, %v537
    %v539 = vand.u32 %v538, 4294901760
    %540 = vmatmul.f32.gmra.mxu0 %v539
    %v541 = vpop.f32.mrf.mxu0
    %v542 = vadd.f32 %v427, %v541
    %543 = vdwg.mxu0
    %544 = vmatpush.msra.mxu0 0.0
    %545 = vmatpush.msra.mxu0 0.0
    %546 = vmatpush.msra.mxu0 0.0
    %547 = vmatpush.msra.mxu0 0.0
    %548 = vmatpush.msra.mxu0 0.0
    %549 = vmatpush.msra.mxu0 0.0
    %550 = vmatpush.msra.mxu0 0.0
    %551 = vmatpush.msra.mxu0 0.0
    %552 = vmatpush.msra.mxu0 0.0
    %553 = vmatpush.msra.mxu0 0.0
    %554 = vmatpush.msra.mxu0 0.0
    %555 = vmatpush.msra.mxu0 0.0
    %556 = vmatpush.msra.mxu0 0.0
    %557 = vmatpush.msra.mxu0 0.0
    %v558 = vand.u32 %v88, 4294901760
    %v559 = vsub.f32 %v88, %v558
    %v560 = vand.u32 %v559, 4294901760
    %561 = vmatpush.msra.mxu0 %v560
    %v562 = vand.u32 %v19, 4294901760
    %v563 = vsub.f32 %v19, %v562
    %v564 = vand.u32 %v563, 4294901760
    %565 = vmatpush.msra.mxu0 %v564
    %v566 = vand.u32 %v39, 4294901760
    %567 = vmatmul.f32.gmra.mxu0 %v566
    %v568 = vpop.f32.mrf.mxu0
    %v569 = vadd.f32 %v452, %v568
    %v570 = vand.u32 %v42, 4294901760
    %571 = vmatmul.f32.gmra.mxu0 %v570
    %v572 = vpop.f32.mrf.mxu0
    %v573 = vadd.f32 %v458, %v572
    %v574 = vand.u32 %v45, 4294901760
    %575 = vmatmul.f32.gmra.mxu0 %v574
    %v576 = vpop.f32.mrf.mxu0
    %v577 = vadd.f32 %v464, %v576
    %v578 = vand.u32 %v48, 4294901760
    %579 = vmatmul.f32.gmra.mxu0 %v578
    %v580 = vpop.f32.mrf.mxu0
    %v581 = vadd.f32 %v470, %v580
    %v582 = vand.u32 %v51, 4294901760
    %583 = vmatmul.f32.gmra.mxu0 %v582
    %v584 = vpop.f32.mrf.mxu0
    %v585 = vadd.f32 %v476, %v584
    %v586 = vand.u32 %v54, 4294901760
    %587 = vmatmul.f32.gmra.mxu0 %v586
    %v588 = vpop.f32.mrf.mxu0
    %v589 = vadd.f32 %v482, %v588
    %v590 = vand.u32 %v57, 4294901760
    %591 = vmatmul.f32.gmra.mxu0 %v590
    %v592 = vpop.f32.mrf.mxu0
    %v593 = vadd.f32 %v488, %v592
    %v594 = vand.u32 %v60, 4294901760
    %595 = vmatmul.f32.gmra.mxu0 %v594
    %v596 = vpop.f32.mrf.mxu0
    %v597 = vadd.f32 %v494, %v596
    %v598 = vand.u32 %v63, 4294901760
    %599 = vmatmul.f32.gmra.mxu0 %v598
    %v600 = vpop.f32.mrf.mxu0
    %v601 = vadd.f32 %v500, %v600
    %v602 = vand.u32 %v66, 4294901760
    %603 = vmatmul.f32.gmra.mxu0 %v602
    %v604 = vpop.f32.mrf.mxu0
    %v605 = vadd.f32 %v506, %v604
    %v606 = vand.u32 %v69, 4294901760
    %607 = vmatmul.f32.gmra.mxu0 %v606
    %v608 = vpop.f32.mrf.mxu0
    %v609 = vadd.f32 %v512, %v608
    %v610 = vand.u32 %v72, 4294901760
    %611 = vmatmul.f32.gmra.mxu0 %v610
    %v612 = vpop.f32.mrf.mxu0
    %v613 = vadd.f32 %v518, %v612
    %v614 = vand.u32 %v75, 4294901760
    %615 = vmatmul.f32.gmra.mxu0 %v614
    %v616 = vpop.f32.mrf.mxu0
    %v617 = vadd.f32 %v524, %v616
    %v618 = vand.u32 %v78, 4294901760
    %619 = vmatmul.f32.gmra.mxu0 %v618
    %v620 = vpop.f32.mrf.mxu0
    %v621 = vadd.f32 %v530, %v620
    %v622 = vand.u32 %v81, 4294901760
    %623 = vmatmul.f32.gmra.mxu0 %v622
    %v624 = vpop.f32.mrf.mxu0
    %v625 = vadd.f32 %v536, %v624
    %v626 = vand.u32 %v84, 4294901760
    %627 = vmatmul.f32.gmra.mxu0 %v626
    %v628 = vpop.f32.mrf.mxu0
    %v629 = vadd.f32 %v542, %v628
    %630 = vdwg.mxu0
    %631 = vmatpush.msra.mxu0 0.0
    %632 = vmatpush.msra.mxu0 0.0
    %633 = vmatpush.msra.mxu0 0.0
    %634 = vmatpush.msra.mxu0 0.0
    %635 = vmatpush.msra.mxu0 0.0
    %636 = vmatpush.msra.mxu0 0.0
    %637 = vmatpush.msra.mxu0 0.0
    %638 = vmatpush.msra.mxu0 0.0
    %639 = vmatpush.msra.mxu0 0.0
    %640 = vmatpush.msra.mxu0 0.0
    %641 = vmatpush.msra.mxu0 0.0
    %642 = vmatpush.msra.mxu0 0.0
    %643 = vmatpush.msra.mxu0 0.0
    %644 = vmatpush.msra.mxu0 0.0
    %v645 = vand.u32 %v88, 4294901760
    %646 = vmatpush.msra.mxu0 %v645
    %v647 = vand.u32 %v19, 4294901760
    %648 = vmatpush.msra.mxu0 %v647
    %v649 = vand.u32 %v39, 4294901760
    %650 = vmatmul.f32.gmra.mxu0 %v649
    %v651 = vpop.f32.mrf.mxu0
    %v652 = vadd.f32 %v569, %v651
    %v653 = vand.u32 %v42, 4294901760
    %654 = vmatmul.f32.gmra.mxu0 %v653
    %v655 = vpop.f32.mrf.mxu0
    %v656 = vadd.f32 %v573, %v655
    %v657 = vand.u32 %v45, 4294901760
    %658 = vmatmul.f32.gmra.mxu0 %v657
    %v659 = vpop.f32.mrf.mxu0
    %v660 = vadd.f32 %v577, %v659
    %v661 = vand.u32 %v48, 4294901760
    %662 = vmatmul.f32.gmra.mxu0 %v661
    %v663 = vpop.f32.mrf.mxu0
    %v664 = vadd.f32 %v581, %v663
    %v665 = vand.u32 %v51, 4294901760
    %666 = vmatmul.f32.gmra.mxu0 %v665
    %v667 = vpop.f32.mrf.mxu0
    %v668 = vadd.f32 %v585, %v667
    %v669 = vand.u32 %v54, 4294901760
    %670 = vmatmul.f32.gmra.mxu0 %v669
    %v671 = vpop.f32.mrf.mxu0
    %v672 = vadd.f32 %v589, %v671
    %v673 = vand.u32 %v57, 4294901760
    %674 = vmatmul.f32.gmra.mxu0 %v673
    %v675 = vpop.f32.mrf.mxu0
    %v676 = vadd.f32 %v593, %v675
    %v677 = vand.u32 %v60, 4294901760
    %678 = vmatmul.f32.gmra.mxu0 %v677
    %v679 = vpop.f32.mrf.mxu0
    %v680 = vadd.f32 %v597, %v679
    %v681 = vand.u32 %v63, 4294901760
    %682 = vmatmul.f32.gmra.mxu0 %v681
    %v683 = vpop.f32.mrf.mxu0
    %v684 = vadd.f32 %v601, %v683
    %v685 = vand.u32 %v66, 4294901760
    %686 = vmatmul.f32.gmra.mxu0 %v685
    %v687 = vpop.f32.mrf.mxu0
    %v688 = vadd.f32 %v605, %v687
    %v689 = vand.u32 %v69, 4294901760
    %690 = vmatmul.f32.gmra.mxu0 %v689
    %v691 = vpop.f32.mrf.mxu0
    %v692 = vadd.f32 %v609, %v691
    %v693 = vand.u32 %v72, 4294901760
    %694 = vmatmul.f32.gmra.mxu0 %v693
    %v695 = vpop.f32.mrf.mxu0
    %v696 = vadd.f32 %v613, %v695
    %v697 = vand.u32 %v75, 4294901760
    %698 = vmatmul.f32.gmra.mxu0 %v697
    %v699 = vpop.f32.mrf.mxu0
    %v700 = vadd.f32 %v617, %v699
    %v701 = vand.u32 %v78, 4294901760
    %702 = vmatmul.f32.gmra.mxu0 %v701
    %v703 = vpop.f32.mrf.mxu0
    %v704 = vadd.f32 %v621, %v703
    %v705 = vand.u32 %v81, 4294901760
    %706 = vmatmul.f32.gmra.mxu0 %v705
    %v707 = vpop.f32.mrf.mxu0
    %v708 = vadd.f32 %v625, %v707
    %v709 = vand.u32 %v84, 4294901760
    %710 = vmatmul.f32.gmra.mxu0 %v709
    %v711 = vpop.f32.mrf.mxu0
    %v712 = vadd.f32 %v629, %v711
    %713 = vdwg.mxu0
    %v714 = vmul.f32 %v652, %v652
    %v715 = vmul.f32 %v656, %v656
    %v716 = vmul.f32 %v660, %v660
    %v717 = vmul.f32 %v664, %v664
    %v718 = vmul.f32 %v668, %v668
    %v719 = vmul.f32 %v672, %v672
    %v720 = vmul.f32 %v676, %v676
    %v721 = vmul.f32 %v680, %v680
    %v722 = vmul.f32 %v684, %v684
    %v723 = vmul.f32 %v688, %v688
    %v724 = vmul.f32 %v692, %v692
    %v725 = vmul.f32 %v696, %v696
    %v726 = vmul.f32 %v700, %v700
    %v727 = vmul.f32 %v704, %v704
    %v728 = vmul.f32 %v708, %v708
    %v729 = vmul.f32 %v712, %v712
    %v730 = vmul.f32 %v714, 0.035677407
    %v731 = vmul.f32 %v715, 0.035677407
    %v732 = vmul.f32 %v716, 0.035677407
    %v733 = vmul.f32 %v717, 0.035677407
    %v734 = vmul.f32 %v718, 0.035677407
    %v735 = vmul.f32 %v719, 0.035677407
    %v736 = vmul.f32 %v720, 0.035677407
    %v737 = vmul.f32 %v721, 0.035677407
    %v738 = vmul.f32 %v722, 0.035677407
    %v739 = vmul.f32 %v723, 0.035677407
    %v740 = vmul.f32 %v724, 0.035677407
    %v741 = vmul.f32 %v725, 0.035677407
    %v742 = vmul.f32 %v726, 0.035677407
    %v743 = vmul.f32 %v727, 0.035677407
    %v744 = vmul.f32 %v728, 0.035677407
    %v745 = vmul.f32 %v729, 0.035677407
    %v746 = vadd.f32 %v730, 0.7978846
    %v747 = vadd.f32 %v731, 0.7978846
    %v748 = vadd.f32 %v732, 0.7978846
    %v749 = vadd.f32 %v733, 0.7978846
    %v750 = vadd.f32 %v734, 0.7978846
    %v751 = vadd.f32 %v735, 0.7978846
    %v752 = vadd.f32 %v736, 0.7978846
    %v753 = vadd.f32 %v737, 0.7978846
    %v754 = vadd.f32 %v738, 0.7978846
    %v755 = vadd.f32 %v739, 0.7978846
    %v756 = vadd.f32 %v740, 0.7978846
    %v757 = vadd.f32 %v741, 0.7978846
    %v758 = vadd.f32 %v742, 0.7978846
    %v759 = vadd.f32 %v743, 0.7978846
    %v760 = vadd.f32 %v744, 0.7978846
    %v761 = vadd.f32 %v745, 0.7978846
    %v762 = vmul.f32 %v652, %v746
    %v763 = vmul.f32 %v656, %v747
    %v764 = vmul.f32 %v660, %v748
    %v765 = vmul.f32 %v664, %v749
    %v766 = vmul.f32 %v668, %v750
    %v767 = vmul.f32 %v672, %v751
    %v768 = vmul.f32 %v676, %v752
    %v769 = vmul.f32 %v680, %v753
    %v770 = vmul.f32 %v684, %v754
    %v771 = vmul.f32 %v688, %v755
    %v772 = vmul.f32 %v692, %v756
    %v773 = vmul.f32 %v696, %v757
    %v774 = vmul.f32 %v700, %v758
    %v775 = vmul.f32 %v704, %v759
    %v776 = vmul.f32 %v708, %v760
    %v777 = vmul.f32 %v712, %v761
    %v778 = vmul.f32 %v652, 0.5
    %v779 = vmul.f32 %v656, 0.5
    %v780 = vmul.f32 %v660, 0.5
    %v781 = vmul.f32 %v664, 0.5
    %v782 = vmul.f32 %v668, 0.5
    %v783 = vmul.f32 %v672, 0.5
    %v784 = vmul.f32 %v676, 0.5
    %v785 = vmul.f32 %v680, 0.5
    %v786 = vmul.f32 %v684, 0.5
    %v787 = vmul.f32 %v688, 0.5
    %v788 = vmul.f32 %v692, 0.5
    %v789 = vmul.f32 %v696, 0.5
    %v790 = vmul.f32 %v700, 0.5
    %v791 = vmul.f32 %v704, 0.5
    %v792 = vmul.f32 %v708, 0.5
    %v793 = vmul.f32 %v712, 0.5
    %v794 = vtanh.pop %v762
    %v795 = vtanh.pop %v763
    %v796 = vtanh.pop %v764
    %v797 = vtanh.pop %v765
    %v798 = vtanh.pop %v766
    %v799 = vtanh.pop %v767
    %v800 = vtanh.pop %v768
    %v801 = vtanh.pop %v769
    %v802 = vtanh.pop %v770
    %v803 = vtanh.pop %v771
    %v804 = vtanh.pop %v772
    %v805 = vtanh.pop %v773
    %v806 = vtanh.pop %v774
    %v807 = vtanh.pop %v775
    %v808 = vtanh.pop %v776
    %v809 = vtanh.pop %v777
    %v810 = vadd.f32 %v794, 1.0
    %v811 = vadd.f32 %v795, 1.0
    %v812 = vadd.f32 %v796, 1.0
    %v813 = vadd.f32 %v797, 1.0
    %v814 = vadd.f32 %v798, 1.0
    %v815 = vadd.f32 %v799, 1.0
    %v816 = vadd.f32 %v800, 1.0
    %v817 = vadd.f32 %v801, 1.0
    %v818 = vadd.f32 %v802, 1.0
    %v819 = vadd.f32 %v803, 1.0
    %v820 = vadd.f32 %v804, 1.0
    %v821 = vadd.f32 %v805, 1.0
    %v822 = vadd.f32 %v806, 1.0
    %v823 = vadd.f32 %v807, 1.0
    %v824 = vadd.f32 %v808, 1.0
    %v825 = vadd.f32 %v809, 1.0
    %v826 = vmul.f32 %v778, %v810
    %v827 = vmul.f32 %v779, %v811
    %v828 = vmul.f32 %v780, %v812
    %v829 = vmul.f32 %v781, %v813
    %v830 = vmul.f32 %v782, %v814
    %v831 = vmul.f32 %v783, %v815
    %v832 = vmul.f32 %v784, %v816
    %v833 = vmul.f32 %v785, %v817
    %v834 = vmul.f32 %v786, %v818
    %v835 = vmul.f32 %v787, %v819
    %v836 = vmul.f32 %v788, %v820
    %v837 = vmul.f32 %v789, %v821
    %v838 = vmul.f32 %v790, %v822
    %v839 = vmul.f32 %v791, %v823
    %v840 = vmul.f32 %v792, %v824
    %v841 = vmul.f32 %v793, %v825
    %v842 = vld [vmem:[%s2] sm:$0x3]
    %v843 = vand.u32 %v841, 4294901760
    %844 = vmatpush.msra.mxu0 %v843
    %v845 = vand.u32 %v840, 4294901760
    %846 = vmatpush.msra.mxu0 %v845
    %v847 = vand.u32 %v839, 4294901760
    %848 = vmatpush.msra.mxu0 %v847
    %v849 = vand.u32 %v838, 4294901760
    %850 = vmatpush.msra.mxu0 %v849
    %v851 = vand.u32 %v837, 4294901760
    %852 = vmatpush.msra.mxu0 %v851
    %v853 = vand.u32 %v836, 4294901760
    %854 = vmatpush.msra.mxu0 %v853
    %v855 = vand.u32 %v835, 4294901760
    %856 = vmatpush.msra.mxu0 %v855
    %v857 = vand.u32 %v834, 4294901760
    %858 = vmatpush.msra.mxu0 %v857
    %v859 = vand.u32 %v833, 4294901760
    %860 = vmatpush.msra.mxu0 %v859
    %v861 = vand.u32 %v832, 4294901760
    %862 = vmatpush.msra.mxu0 %v861
    %v863 = vand.u32 %v831, 4294901760
    %864 = vmatpush.msra.mxu0 %v863
    %v865 = vand.u32 %v830, 4294901760
    %866 = vmatpush.msra.mxu0 %v865
    %v867 = vand.u32 %v829, 4294901760
    %868 = vmatpush.msra.mxu0 %v867
    %v869 = vand.u32 %v828, 4294901760
    %870 = vmatpush.msra.mxu0 %v869
    %v871 = vand.u32 %v827, 4294901760
    %872 = vmatpush.msra.mxu0 %v871
    %v873 = vand.u32 %v826, 4294901760
    %874 = vmatpush.msra.mxu0 %v873
    %v875 = vand.u32 %v842, 4294901760
    %v876 = vsub.f32 %v842, %v875
    %v877 = vand.u32 %v876, 4294901760
    %v878 = vsub.f32 %v876, %v877
    %v879 = vand.u32 %v878, 4294901760
    %880 = vmatmul.f32.gmra.mxu0 %v879
    %v881 = vpop.f32.mrf.mxu0
    %v882 = vadd.f32 0.0, %v881
    %883 = vdwg.mxu0
    %v884 = vand.u32 %v841, 4294901760
    %v885 = vsub.f32 %v841, %v884
    %v886 = vand.u32 %v885, 4294901760
    %v887 = vsub.f32 %v885, %v886
    %v888 = vand.u32 %v887, 4294901760
    %889 = vmatpush.msra.mxu0 %v888
    %v890 = vand.u32 %v840, 4294901760
    %v891 = vsub.f32 %v840, %v890
    %v892 = vand.u32 %v891, 4294901760
    %v893 = vsub.f32 %v891, %v892
    %v894 = vand.u32 %v893, 4294901760
    %895 = vmatpush.msra.mxu0 %v894
    %v896 = vand.u32 %v839, 4294901760
    %v897 = vsub.f32 %v839, %v896
    %v898 = vand.u32 %v897, 4294901760
    %v899 = vsub.f32 %v897, %v898
    %v900 = vand.u32 %v899, 4294901760
    %901 = vmatpush.msra.mxu0 %v900
    %v902 = vand.u32 %v838, 4294901760
    %v903 = vsub.f32 %v838, %v902
    %v904 = vand.u32 %v903, 4294901760
    %v905 = vsub.f32 %v903, %v904
    %v906 = vand.u32 %v905, 4294901760
    %907 = vmatpush.msra.mxu0 %v906
    %v908 = vand.u32 %v837, 4294901760
    %v909 = vsub.f32 %v837, %v908
    %v910 = vand.u32 %v909, 4294901760
    %v911 = vsub.f32 %v909, %v910
    %v912 = vand.u32 %v911, 4294901760
    %913 = vmatpush.msra.mxu0 %v912
    %v914 = vand.u32 %v836, 4294901760
    %v915 = vsub.f32 %v836, %v914
    %v916 = vand.u32 %v915, 4294901760
    %v917 = vsub.f32 %v915, %v916
    %v918 = vand.u32 %v917, 4294901760
    %919 = vmatpush.msra.mxu0 %v918
    %v920 = vand.u32 %v835, 4294901760
    %v921 = vsub.f32 %v835, %v920
    %v922 = vand.u32 %v921, 4294901760
    %v923 = vsub.f32 %v921, %v922
    %v924 = vand.u32 %v923, 4294901760
    %925 = vmatpush.msra.mxu0 %v924
    %v926 = vand.u32 %v834, 4294901760
    %v927 = vsub.f32 %v834, %v926
    %v928 = vand.u32 %v927, 4294901760
    %v929 = vsub.f32 %v927, %v928
    %v930 = vand.u32 %v929, 4294901760
    %931 = vmatpush.msra.mxu0 %v930
    %v932 = vand.u32 %v833, 4294901760
    %v933 = vsub.f32 %v833, %v932
    %v934 = vand.u32 %v933, 4294901760
    %v935 = vsub.f32 %v933, %v934
    %v936 = vand.u32 %v935, 4294901760
    %937 = vmatpush.msra.mxu0 %v936
    %v938 = vand.u32 %v832, 4294901760
    %v939 = vsub.f32 %v832, %v938
    %v940 = vand.u32 %v939, 4294901760
    %v941 = vsub.f32 %v939, %v940
    %v942 = vand.u32 %v941, 4294901760
    %943 = vmatpush.msra.mxu0 %v942
    %v944 = vand.u32 %v831, 4294901760
    %v945 = vsub.f32 %v831, %v944
    %v946 = vand.u32 %v945, 4294901760
    %v947 = vsub.f32 %v945, %v946
    %v948 = vand.u32 %v947, 4294901760
    %949 = vmatpush.msra.mxu0 %v948
    %v950 = vand.u32 %v830, 4294901760
    %v951 = vsub.f32 %v830, %v950
    %v952 = vand.u32 %v951, 4294901760
    %v953 = vsub.f32 %v951, %v952
    %v954 = vand.u32 %v953, 4294901760
    %955 = vmatpush.msra.mxu0 %v954
    %v956 = vand.u32 %v829, 4294901760
    %v957 = vsub.f32 %v829, %v956
    %v958 = vand.u32 %v957, 4294901760
    %v959 = vsub.f32 %v957, %v958
    %v960 = vand.u32 %v959, 4294901760
    %961 = vmatpush.msra.mxu0 %v960
    %v962 = vand.u32 %v828, 4294901760
    %v963 = vsub.f32 %v828, %v962
    %v964 = vand.u32 %v963, 4294901760
    %v965 = vsub.f32 %v963, %v964
    %v966 = vand.u32 %v965, 4294901760
    %967 = vmatpush.msra.mxu0 %v966
    %v968 = vand.u32 %v827, 4294901760
    %v969 = vsub.f32 %v827, %v968
    %v970 = vand.u32 %v969, 4294901760
    %v971 = vsub.f32 %v969, %v970
    %v972 = vand.u32 %v971, 4294901760
    %973 = vmatpush.msra.mxu0 %v972
    %v974 = vand.u32 %v826, 4294901760
    %v975 = vsub.f32 %v826, %v974
    %v976 = vand.u32 %v975, 4294901760
    %v977 = vsub.f32 %v975, %v976
    %v978 = vand.u32 %v977, 4294901760
    %979 = vmatpush.msra.mxu0 %v978
    %v980 = vand.u32 %v842, 4294901760
    %981 = vmatmul.f32.gmra.mxu0 %v980
    %v982 = vpop.f32.mrf.mxu0
    %v983 = vadd.f32 %v882, %v982
    %984 = vdwg.mxu0
    %v985 = vand.u32 %v841, 4294901760
    %v986 = vsub.f32 %v841, %v985
    %987 = vmatpush.msra.mxu0 %v986
    %v988 = vand.u32 %v840, 4294901760
    %v989 = vsub.f32 %v840, %v988
    %990 = vmatpush.msra.mxu0 %v989
    %v991 = vand.u32 %v839, 4294901760
    %v992 = vsub.f32 %v839, %v991
    %993 = vmatpush.msra.mxu0 %v992
    %v994 = vand.u32 %v838, 4294901760
    %v995 = vsub.f32 %v838, %v994
    %996 = vmatpush.msra.mxu0 %v995
    %v997 = vand.u32 %v837, 4294901760
    %v998 = vsub.f32 %v837, %v997
    %999 = vmatpush.msra.mxu0 %v998
    %v1000 = vand.u32 %v836, 4294901760
    %v1001 = vsub.f32 %v836, %v1000
    %1002 = vmatpush.msra.mxu0 %v1001
    %v1003 = vand.u32 %v835, 4294901760
    %v1004 = vsub.f32 %v835, %v1003
    %1005 = vmatpush.msra.mxu0 %v1004
    %v1006 = vand.u32 %v834, 4294901760
    %v1007 = vsub.f32 %v834, %v1006
    %1008 = vmatpush.msra.mxu0 %v1007
    %v1009 = vand.u32 %v833, 4294901760
    %v1010 = vsub.f32 %v833, %v1009
    %1011 = vmatpush.msra.mxu0 %v1010
    %v1012 = vand.u32 %v832, 4294901760
    %v1013 = vsub.f32 %v832, %v1012
    %1014 = vmatpush.msra.mxu0 %v1013
    %v1015 = vand.u32 %v831, 4294901760
    %v1016 = vsub.f32 %v831, %v1015
    %1017 = vmatpush.msra.mxu0 %v1016
    %v1018 = vand.u32 %v830, 4294901760
    %v1019 = vsub.f32 %v830, %v1018
    %1020 = vmatpush.msra.mxu0 %v1019
    %v1021 = vand.u32 %v829, 4294901760
    %v1022 = vsub.f32 %v829, %v1021
    %1023 = vmatpush.msra.mxu0 %v1022
    %v1024 = vand.u32 %v828, 4294901760
    %v1025 = vsub.f32 %v828, %v1024
    %1026 = vmatpush.msra.mxu0 %v1025
    %v1027 = vand.u32 %v827, 4294901760
    %v1028 = vsub.f32 %v827, %v1027
    %1029 = vmatpush.msra.mxu0 %v1028
    %v1030 = vand.u32 %v826, 4294901760
    %v1031 = vsub.f32 %v826, %v1030
    %1032 = vmatpush.msra.mxu0 %v1031
    %v1033 = vand.u32 %v842, 4294901760
    %v1034 = vsub.f32 %v842, %v1033
    %1035 = vmatmul.f32.gmra.mxu0 %v1034
    %v1036 = vpop.f32.mrf.mxu0
    %v1037 = vadd.f32 %v983, %v1036
    %1038 = vdwg.mxu0
    %v1039 = vand.u32 %v841, 4294901760
    %1040 = vmatpush.msra.mxu0 %v1039
    %v1041 = vand.u32 %v840, 4294901760
    %1042 = vmatpush.msra.mxu0 %v1041
    %v1043 = vand.u32 %v839, 4294901760
    %1044 = vmatpush.msra.mxu0 %v1043
    %v1045 = vand.u32 %v838, 4294901760
    %1046 = vmatpush.msra.mxu0 %v1045
    %v1047 = vand.u32 %v837, 4294901760
    %1048 = vmatpush.msra.mxu0 %v1047
    %v1049 = vand.u32 %v836, 4294901760
    %1050 = vmatpush.msra.mxu0 %v1049
    %v1051 = vand.u32 %v835, 4294901760
    %1052 = vmatpush.msra.mxu0 %v1051
    %v1053 = vand.u32 %v834, 4294901760
    %1054 = vmatpush.msra.mxu0 %v1053
    %v1055 = vand.u32 %v833, 4294901760
    %1056 = vmatpush.msra.mxu0 %v1055
    %v1057 = vand.u32 %v832, 4294901760
    %1058 = vmatpush.msra.mxu0 %v1057
    %v1059 = vand.u32 %v831, 4294901760
    %1060 = vmatpush.msra.mxu0 %v1059
    %v1061 = vand.u32 %v830, 4294901760
    %1062 = vmatpush.msra.mxu0 %v1061
    %v1063 = vand.u32 %v829, 4294901760
    %1064 = vmatpush.msra.mxu0 %v1063
    %v1065 = vand.u32 %v828, 4294901760
    %1066 = vmatpush.msra.mxu0 %v1065
    %v1067 = vand.u32 %v827, 4294901760
    %1068 = vmatpush.msra.mxu0 %v1067
    %v1069 = vand.u32 %v826, 4294901760
    %1070 = vmatpush.msra.mxu0 %v1069
    %v1071 = vand.u32 %v842, 4294901760
    %v1072 = vsub.f32 %v842, %v1071
    %v1073 = vand.u32 %v1072, 4294901760
    %1074 = vmatmul.f32.gmra.mxu0 %v1073
    %v1075 = vpop.f32.mrf.mxu0
    %v1076 = vadd.f32 %v1037, %v1075
    %1077 = vdwg.mxu0
    %v1078 = vand.u32 %v841, 4294901760
    %v1079 = vsub.f32 %v841, %v1078
    %v1080 = vand.u32 %v1079, 4294901760
    %1081 = vmatpush.msra.mxu0 %v1080
    %v1082 = vand.u32 %v840, 4294901760
    %v1083 = vsub.f32 %v840, %v1082
    %v1084 = vand.u32 %v1083, 4294901760
    %1085 = vmatpush.msra.mxu0 %v1084
    %v1086 = vand.u32 %v839, 4294901760
    %v1087 = vsub.f32 %v839, %v1086
    %v1088 = vand.u32 %v1087, 4294901760
    %1089 = vmatpush.msra.mxu0 %v1088
    %v1090 = vand.u32 %v838, 4294901760
    %v1091 = vsub.f32 %v838, %v1090
    %v1092 = vand.u32 %v1091, 4294901760
    %1093 = vmatpush.msra.mxu0 %v1092
    %v1094 = vand.u32 %v837, 4294901760
    %v1095 = vsub.f32 %v837, %v1094
    %v1096 = vand.u32 %v1095, 4294901760
    %1097 = vmatpush.msra.mxu0 %v1096
    %v1098 = vand.u32 %v836, 4294901760
    %v1099 = vsub.f32 %v836, %v1098
    %v1100 = vand.u32 %v1099, 4294901760
    %1101 = vmatpush.msra.mxu0 %v1100
    %v1102 = vand.u32 %v835, 4294901760
    %v1103 = vsub.f32 %v835, %v1102
    %v1104 = vand.u32 %v1103, 4294901760
    %1105 = vmatpush.msra.mxu0 %v1104
    %v1106 = vand.u32 %v834, 4294901760
    %v1107 = vsub.f32 %v834, %v1106
    %v1108 = vand.u32 %v1107, 4294901760
    %1109 = vmatpush.msra.mxu0 %v1108
    %v1110 = vand.u32 %v833, 4294901760
    %v1111 = vsub.f32 %v833, %v1110
    %v1112 = vand.u32 %v1111, 4294901760
    %1113 = vmatpush.msra.mxu0 %v1112
    %v1114 = vand.u32 %v832, 4294901760
    %v1115 = vsub.f32 %v832, %v1114
    %v1116 = vand.u32 %v1115, 4294901760
    %1117 = vmatpush.msra.mxu0 %v1116
    %v1118 = vand.u32 %v831, 4294901760
    %v1119 = vsub.f32 %v831, %v1118
    %v1120 = vand.u32 %v1119, 4294901760
    %1121 = vmatpush.msra.mxu0 %v1120
    %v1122 = vand.u32 %v830, 4294901760
    %v1123 = vsub.f32 %v830, %v1122
    %v1124 = vand.u32 %v1123, 4294901760
    %1125 = vmatpush.msra.mxu0 %v1124
    %v1126 = vand.u32 %v829, 4294901760
    %v1127 = vsub.f32 %v829, %v1126
    %v1128 = vand.u32 %v1127, 4294901760
    %1129 = vmatpush.msra.mxu0 %v1128
    %v1130 = vand.u32 %v828, 4294901760
    %v1131 = vsub.f32 %v828, %v1130
    %v1132 = vand.u32 %v1131, 4294901760
    %1133 = vmatpush.msra.mxu0 %v1132
    %v1134 = vand.u32 %v827, 4294901760
    %v1135 = vsub.f32 %v827, %v1134
    %v1136 = vand.u32 %v1135, 4294901760
    %1137 = vmatpush.msra.mxu0 %v1136
    %v1138 = vand.u32 %v826, 4294901760
    %v1139 = vsub.f32 %v826, %v1138
    %v1140 = vand.u32 %v1139, 4294901760
    %1141 = vmatpush.msra.mxu0 %v1140
    %v1142 = vand.u32 %v842, 4294901760
    %1143 = vmatmul.f32.gmra.mxu0 %v1142
    %v1144 = vpop.f32.mrf.mxu0
    %v1145 = vadd.f32 %v1076, %v1144
    %1146 = vdwg.mxu0
    %v1147 = vand.u32 %v841, 4294901760
    %1148 = vmatpush.msra.mxu0 %v1147
    %v1149 = vand.u32 %v840, 4294901760
    %1150 = vmatpush.msra.mxu0 %v1149
    %v1151 = vand.u32 %v839, 4294901760
    %1152 = vmatpush.msra.mxu0 %v1151
    %v1153 = vand.u32 %v838, 4294901760
    %1154 = vmatpush.msra.mxu0 %v1153
    %v1155 = vand.u32 %v837, 4294901760
    %1156 = vmatpush.msra.mxu0 %v1155
    %v1157 = vand.u32 %v836, 4294901760
    %1158 = vmatpush.msra.mxu0 %v1157
    %v1159 = vand.u32 %v835, 4294901760
    %1160 = vmatpush.msra.mxu0 %v1159
    %v1161 = vand.u32 %v834, 4294901760
    %1162 = vmatpush.msra.mxu0 %v1161
    %v1163 = vand.u32 %v833, 4294901760
    %1164 = vmatpush.msra.mxu0 %v1163
    %v1165 = vand.u32 %v832, 4294901760
    %1166 = vmatpush.msra.mxu0 %v1165
    %v1167 = vand.u32 %v831, 4294901760
    %1168 = vmatpush.msra.mxu0 %v1167
    %v1169 = vand.u32 %v830, 4294901760
    %1170 = vmatpush.msra.mxu0 %v1169
    %v1171 = vand.u32 %v829, 4294901760
    %1172 = vmatpush.msra.mxu0 %v1171
    %v1173 = vand.u32 %v828, 4294901760
    %1174 = vmatpush.msra.mxu0 %v1173
    %v1175 = vand.u32 %v827, 4294901760
    %1176 = vmatpush.msra.mxu0 %v1175
    %v1177 = vand.u32 %v826, 4294901760
    %1178 = vmatpush.msra.mxu0 %v1177
    %v1179 = vand.u32 %v842, 4294901760
    %1180 = vmatmul.f32.gmra.mxu0 %v1179
    %v1181 = vpop.f32.mrf.mxu0
    %v1182 = vadd.f32 %v1145, %v1181
    %1183 = vdwg.mxu0
    %v1184 = vmul.f32 %v826, %v826
    %v1185 = vmul.f32 %v827, %v827
    %v1186 = vmul.f32 %v828, %v828
    %v1187 = vmul.f32 %v829, %v829
    %v1188 = vmul.f32 %v830, %v830
    %v1189 = vmul.f32 %v831, %v831
    %v1190 = vmul.f32 %v832, %v832
    %v1191 = vmul.f32 %v833, %v833
    %v1192 = vmul.f32 %v834, %v834
    %v1193 = vmul.f32 %v835, %v835
    %v1194 = vmul.f32 %v836, %v836
    %v1195 = vmul.f32 %v837, %v837
    %v1196 = vmul.f32 %v838, %v838
    %v1197 = vmul.f32 %v839, %v839
    %v1198 = vmul.f32 %v840, %v840
    %v1199 = vmul.f32 %v841, %v841
    %v1200 = vand.u32 %v1199, 4294901760
    %1201 = vmatpush.msra.mxu0 %v1200
    %v1202 = vand.u32 %v1198, 4294901760
    %1203 = vmatpush.msra.mxu0 %v1202
    %v1204 = vand.u32 %v1197, 4294901760
    %1205 = vmatpush.msra.mxu0 %v1204
    %v1206 = vand.u32 %v1196, 4294901760
    %1207 = vmatpush.msra.mxu0 %v1206
    %v1208 = vand.u32 %v1195, 4294901760
    %1209 = vmatpush.msra.mxu0 %v1208
    %v1210 = vand.u32 %v1194, 4294901760
    %1211 = vmatpush.msra.mxu0 %v1210
    %v1212 = vand.u32 %v1193, 4294901760
    %1213 = vmatpush.msra.mxu0 %v1212
    %v1214 = vand.u32 %v1192, 4294901760
    %1215 = vmatpush.msra.mxu0 %v1214
    %v1216 = vand.u32 %v1191, 4294901760
    %1217 = vmatpush.msra.mxu0 %v1216
    %v1218 = vand.u32 %v1190, 4294901760
    %1219 = vmatpush.msra.mxu0 %v1218
    %v1220 = vand.u32 %v1189, 4294901760
    %1221 = vmatpush.msra.mxu0 %v1220
    %v1222 = vand.u32 %v1188, 4294901760
    %1223 = vmatpush.msra.mxu0 %v1222
    %v1224 = vand.u32 %v1187, 4294901760
    %1225 = vmatpush.msra.mxu0 %v1224
    %v1226 = vand.u32 %v1186, 4294901760
    %1227 = vmatpush.msra.mxu0 %v1226
    %v1228 = vand.u32 %v1185, 4294901760
    %1229 = vmatpush.msra.mxu0 %v1228
    %v1230 = vand.u32 %v1184, 4294901760
    %1231 = vmatpush.msra.mxu0 %v1230
    %v1232 = vand.u32 %v842, 4294901760
    %v1233 = vsub.f32 %v842, %v1232
    %v1234 = vand.u32 %v1233, 4294901760
    %v1235 = vsub.f32 %v1233, %v1234
    %v1236 = vand.u32 %v1235, 4294901760
    %1237 = vmatmul.f32.gmra.mxu0 %v1236
    %v1238 = vpop.f32.mrf.mxu0
    %v1239 = vadd.f32 0.0, %v1238
    %1240 = vdwg.mxu0
    %v1241 = vand.u32 %v1199, 4294901760
    %v1242 = vsub.f32 %v1199, %v1241
    %v1243 = vand.u32 %v1242, 4294901760
    %v1244 = vsub.f32 %v1242, %v1243
    %v1245 = vand.u32 %v1244, 4294901760
    %1246 = vmatpush.msra.mxu0 %v1245
    %v1247 = vand.u32 %v1198, 4294901760
    %v1248 = vsub.f32 %v1198, %v1247
    %v1249 = vand.u32 %v1248, 4294901760
    %v1250 = vsub.f32 %v1248, %v1249
    %v1251 = vand.u32 %v1250, 4294901760
    %1252 = vmatpush.msra.mxu0 %v1251
    %v1253 = vand.u32 %v1197, 4294901760
    %v1254 = vsub.f32 %v1197, %v1253
    %v1255 = vand.u32 %v1254, 4294901760
    %v1256 = vsub.f32 %v1254, %v1255
    %v1257 = vand.u32 %v1256, 4294901760
    %1258 = vmatpush.msra.mxu0 %v1257
    %v1259 = vand.u32 %v1196, 4294901760
    %v1260 = vsub.f32 %v1196, %v1259
    %v1261 = vand.u32 %v1260, 4294901760
    %v1262 = vsub.f32 %v1260, %v1261
    %v1263 = vand.u32 %v1262, 4294901760
    %1264 = vmatpush.msra.mxu0 %v1263
    %v1265 = vand.u32 %v1195, 4294901760
    %v1266 = vsub.f32 %v1195, %v1265
    %v1267 = vand.u32 %v1266, 4294901760
    %v1268 = vsub.f32 %v1266, %v1267
    %v1269 = vand.u32 %v1268, 4294901760
    %1270 = vmatpush.msra.mxu0 %v1269
    %v1271 = vand.u32 %v1194, 4294901760
    %v1272 = vsub.f32 %v1194, %v1271
    %v1273 = vand.u32 %v1272, 4294901760
    %v1274 = vsub.f32 %v1272, %v1273
    %v1275 = vand.u32 %v1274, 4294901760
    %1276 = vmatpush.msra.mxu0 %v1275
    %v1277 = vand.u32 %v1193, 4294901760
    %v1278 = vsub.f32 %v1193, %v1277
    %v1279 = vand.u32 %v1278, 4294901760
    %v1280 = vsub.f32 %v1278, %v1279
    %v1281 = vand.u32 %v1280, 4294901760
    %1282 = vmatpush.msra.mxu0 %v1281
    %v1283 = vand.u32 %v1192, 4294901760
    %v1284 = vsub.f32 %v1192, %v1283
    %v1285 = vand.u32 %v1284, 4294901760
    %v1286 = vsub.f32 %v1284, %v1285
    %v1287 = vand.u32 %v1286, 4294901760
    %1288 = vmatpush.msra.mxu0 %v1287
    %v1289 = vand.u32 %v1191, 4294901760
    %v1290 = vsub.f32 %v1191, %v1289
    %v1291 = vand.u32 %v1290, 4294901760
    %v1292 = vsub.f32 %v1290, %v1291
    %v1293 = vand.u32 %v1292, 4294901760
    %1294 = vmatpush.msra.mxu0 %v1293
    %v1295 = vand.u32 %v1190, 4294901760
    %v1296 = vsub.f32 %v1190, %v1295
    %v1297 = vand.u32 %v1296, 4294901760
    %v1298 = vsub.f32 %v1296, %v1297
    %v1299 = vand.u32 %v1298, 4294901760
    %1300 = vmatpush.msra.mxu0 %v1299
    %v1301 = vand.u32 %v1189, 4294901760
    %v1302 = vsub.f32 %v1189, %v1301
    %v1303 = vand.u32 %v1302, 4294901760
    %v1304 = vsub.f32 %v1302, %v1303
    %v1305 = vand.u32 %v1304, 4294901760
    %1306 = vmatpush.msra.mxu0 %v1305
    %v1307 = vand.u32 %v1188, 4294901760
    %v1308 = vsub.f32 %v1188, %v1307
    %v1309 = vand.u32 %v1308, 4294901760
    %v1310 = vsub.f32 %v1308, %v1309
    %v1311 = vand.u32 %v1310, 4294901760
    %1312 = vmatpush.msra.mxu0 %v1311
    %v1313 = vand.u32 %v1187, 4294901760
    %v1314 = vsub.f32 %v1187, %v1313
    %v1315 = vand.u32 %v1314, 4294901760
    %v1316 = vsub.f32 %v1314, %v1315
    %v1317 = vand.u32 %v1316, 4294901760
    %1318 = vmatpush.msra.mxu0 %v1317
    %v1319 = vand.u32 %v1186, 4294901760
    %v1320 = vsub.f32 %v1186, %v1319
    %v1321 = vand.u32 %v1320, 4294901760
    %v1322 = vsub.f32 %v1320, %v1321
    %v1323 = vand.u32 %v1322, 4294901760
    %1324 = vmatpush.msra.mxu0 %v1323
    %v1325 = vand.u32 %v1185, 4294901760
    %v1326 = vsub.f32 %v1185, %v1325
    %v1327 = vand.u32 %v1326, 4294901760
    %v1328 = vsub.f32 %v1326, %v1327
    %v1329 = vand.u32 %v1328, 4294901760
    %1330 = vmatpush.msra.mxu0 %v1329
    %v1331 = vand.u32 %v1184, 4294901760
    %v1332 = vsub.f32 %v1184, %v1331
    %v1333 = vand.u32 %v1332, 4294901760
    %v1334 = vsub.f32 %v1332, %v1333
    %v1335 = vand.u32 %v1334, 4294901760
    %1336 = vmatpush.msra.mxu0 %v1335
    %v1337 = vand.u32 %v842, 4294901760
    %1338 = vmatmul.f32.gmra.mxu0 %v1337
    %v1339 = vpop.f32.mrf.mxu0
    %v1340 = vadd.f32 %v1239, %v1339
    %1341 = vdwg.mxu0
    %v1342 = vand.u32 %v1199, 4294901760
    %v1343 = vsub.f32 %v1199, %v1342
    %1344 = vmatpush.msra.mxu0 %v1343
    %v1345 = vand.u32 %v1198, 4294901760
    %v1346 = vsub.f32 %v1198, %v1345
    %1347 = vmatpush.msra.mxu0 %v1346
    %v1348 = vand.u32 %v1197, 4294901760
    %v1349 = vsub.f32 %v1197, %v1348
    %1350 = vmatpush.msra.mxu0 %v1349
    %v1351 = vand.u32 %v1196, 4294901760
    %v1352 = vsub.f32 %v1196, %v1351
    %1353 = vmatpush.msra.mxu0 %v1352
    %v1354 = vand.u32 %v1195, 4294901760
    %v1355 = vsub.f32 %v1195, %v1354
    %1356 = vmatpush.msra.mxu0 %v1355
    %v1357 = vand.u32 %v1194, 4294901760
    %v1358 = vsub.f32 %v1194, %v1357
    %1359 = vmatpush.msra.mxu0 %v1358
    %v1360 = vand.u32 %v1193, 4294901760
    %v1361 = vsub.f32 %v1193, %v1360
    %1362 = vmatpush.msra.mxu0 %v1361
    %v1363 = vand.u32 %v1192, 4294901760
    %v1364 = vsub.f32 %v1192, %v1363
    %1365 = vmatpush.msra.mxu0 %v1364
    %v1366 = vand.u32 %v1191, 4294901760
    %v1367 = vsub.f32 %v1191, %v1366
    %1368 = vmatpush.msra.mxu0 %v1367
    %v1369 = vand.u32 %v1190, 4294901760
    %v1370 = vsub.f32 %v1190, %v1369
    %1371 = vmatpush.msra.mxu0 %v1370
    %v1372 = vand.u32 %v1189, 4294901760
    %v1373 = vsub.f32 %v1189, %v1372
    %1374 = vmatpush.msra.mxu0 %v1373
    %v1375 = vand.u32 %v1188, 4294901760
    %v1376 = vsub.f32 %v1188, %v1375
    %1377 = vmatpush.msra.mxu0 %v1376
    %v1378 = vand.u32 %v1187, 4294901760
    %v1379 = vsub.f32 %v1187, %v1378
    %1380 = vmatpush.msra.mxu0 %v1379
    %v1381 = vand.u32 %v1186, 4294901760
    %v1382 = vsub.f32 %v1186, %v1381
    %1383 = vmatpush.msra.mxu0 %v1382
    %v1384 = vand.u32 %v1185, 4294901760
    %v1385 = vsub.f32 %v1185, %v1384
    %1386 = vmatpush.msra.mxu0 %v1385
    %v1387 = vand.u32 %v1184, 4294901760
    %v1388 = vsub.f32 %v1184, %v1387
    %1389 = vmatpush.msra.mxu0 %v1388
    %v1390 = vand.u32 %v842, 4294901760
    %v1391 = vsub.f32 %v842, %v1390
    %1392 = vmatmul.f32.gmra.mxu0 %v1391
    %v1393 = vpop.f32.mrf.mxu0
    %v1394 = vadd.f32 %v1340, %v1393
    %1395 = vdwg.mxu0
    %v1396 = vand.u32 %v1199, 4294901760
    %1397 = vmatpush.msra.mxu0 %v1396
    %v1398 = vand.u32 %v1198, 4294901760
    %1399 = vmatpush.msra.mxu0 %v1398
    %v1400 = vand.u32 %v1197, 4294901760
    %1401 = vmatpush.msra.mxu0 %v1400
    %v1402 = vand.u32 %v1196, 4294901760
    %1403 = vmatpush.msra.mxu0 %v1402
    %v1404 = vand.u32 %v1195, 4294901760
    %1405 = vmatpush.msra.mxu0 %v1404
    %v1406 = vand.u32 %v1194, 4294901760
    %1407 = vmatpush.msra.mxu0 %v1406
    %v1408 = vand.u32 %v1193, 4294901760
    %1409 = vmatpush.msra.mxu0 %v1408
    %v1410 = vand.u32 %v1192, 4294901760
    %1411 = vmatpush.msra.mxu0 %v1410
    %v1412 = vand.u32 %v1191, 4294901760
    %1413 = vmatpush.msra.mxu0 %v1412
    %v1414 = vand.u32 %v1190, 4294901760
    %1415 = vmatpush.msra.mxu0 %v1414
    %v1416 = vand.u32 %v1189, 4294901760
    %1417 = vmatpush.msra.mxu0 %v1416
    %v1418 = vand.u32 %v1188, 4294901760
    %1419 = vmatpush.msra.mxu0 %v1418
    %v1420 = vand.u32 %v1187, 4294901760
    %1421 = vmatpush.msra.mxu0 %v1420
    %v1422 = vand.u32 %v1186, 4294901760
    %1423 = vmatpush.msra.mxu0 %v1422
    %v1424 = vand.u32 %v1185, 4294901760
    %1425 = vmatpush.msra.mxu0 %v1424
    %v1426 = vand.u32 %v1184, 4294901760
    %1427 = vmatpush.msra.mxu0 %v1426
    %v1428 = vand.u32 %v842, 4294901760
    %v1429 = vsub.f32 %v842, %v1428
    %v1430 = vand.u32 %v1429, 4294901760
    %1431 = vmatmul.f32.gmra.mxu0 %v1430
    %v1432 = vpop.f32.mrf.mxu0
    %v1433 = vadd.f32 %v1394, %v1432
    %1434 = vdwg.mxu0
    %v1435 = vand.u32 %v1199, 4294901760
    %v1436 = vsub.f32 %v1199, %v1435
    %v1437 = vand.u32 %v1436, 4294901760
    %1438 = vmatpush.msra.mxu0 %v1437
    %v1439 = vand.u32 %v1198, 4294901760
    %v1440 = vsub.f32 %v1198, %v1439
    %v1441 = vand.u32 %v1440, 4294901760
    %1442 = vmatpush.msra.mxu0 %v1441
    %v1443 = vand.u32 %v1197, 4294901760
    %v1444 = vsub.f32 %v1197, %v1443
    %v1445 = vand.u32 %v1444, 4294901760
    %1446 = vmatpush.msra.mxu0 %v1445
    %v1447 = vand.u32 %v1196, 4294901760
    %v1448 = vsub.f32 %v1196, %v1447
    %v1449 = vand.u32 %v1448, 4294901760
    %1450 = vmatpush.msra.mxu0 %v1449
    %v1451 = vand.u32 %v1195, 4294901760
    %v1452 = vsub.f32 %v1195, %v1451
    %v1453 = vand.u32 %v1452, 4294901760
    %1454 = vmatpush.msra.mxu0 %v1453
    %v1455 = vand.u32 %v1194, 4294901760
    %v1456 = vsub.f32 %v1194, %v1455
    %v1457 = vand.u32 %v1456, 4294901760
    %1458 = vmatpush.msra.mxu0 %v1457
    %v1459 = vand.u32 %v1193, 4294901760
    %v1460 = vsub.f32 %v1193, %v1459
    %v1461 = vand.u32 %v1460, 4294901760
    %1462 = vmatpush.msra.mxu0 %v1461
    %v1463 = vand.u32 %v1192, 4294901760
    %v1464 = vsub.f32 %v1192, %v1463
    %v1465 = vand.u32 %v1464, 4294901760
    %1466 = vmatpush.msra.mxu0 %v1465
    %v1467 = vand.u32 %v1191, 4294901760
    %v1468 = vsub.f32 %v1191, %v1467
    %v1469 = vand.u32 %v1468, 4294901760
    %1470 = vmatpush.msra.mxu0 %v1469
    %v1471 = vand.u32 %v1190, 4294901760
    %v1472 = vsub.f32 %v1190, %v1471
    %v1473 = vand.u32 %v1472, 4294901760
    %1474 = vmatpush.msra.mxu0 %v1473
    %v1475 = vand.u32 %v1189, 4294901760
    %v1476 = vsub.f32 %v1189, %v1475
    %v1477 = vand.u32 %v1476, 4294901760
    %1478 = vmatpush.msra.mxu0 %v1477
    %v1479 = vand.u32 %v1188, 4294901760
    %v1480 = vsub.f32 %v1188, %v1479
    %v1481 = vand.u32 %v1480, 4294901760
    %1482 = vmatpush.msra.mxu0 %v1481
    %v1483 = vand.u32 %v1187, 4294901760
    %v1484 = vsub.f32 %v1187, %v1483
    %v1485 = vand.u32 %v1484, 4294901760
    %1486 = vmatpush.msra.mxu0 %v1485
    %v1487 = vand.u32 %v1186, 4294901760
    %v1488 = vsub.f32 %v1186, %v1487
    %v1489 = vand.u32 %v1488, 4294901760
    %1490 = vmatpush.msra.mxu0 %v1489
    %v1491 = vand.u32 %v1185, 4294901760
    %v1492 = vsub.f32 %v1185, %v1491
    %v1493 = vand.u32 %v1492, 4294901760
    %1494 = vmatpush.msra.mxu0 %v1493
    %v1495 = vand.u32 %v1184, 4294901760
    %v1496 = vsub.f32 %v1184, %v1495
    %v1497 = vand.u32 %v1496, 4294901760
    %1498 = vmatpush.msra.mxu0 %v1497
    %v1499 = vand.u32 %v842, 4294901760
    %1500 = vmatmul.f32.gmra.mxu0 %v1499
    %v1501 = vpop.f32.mrf.mxu0
    %v1502 = vadd.f32 %v1433, %v1501
    %1503 = vdwg.mxu0
    %v1504 = vand.u32 %v1199, 4294901760
    %1505 = vmatpush.msra.mxu0 %v1504
    %v1506 = vand.u32 %v1198, 4294901760
    %1507 = vmatpush.msra.mxu0 %v1506
    %v1508 = vand.u32 %v1197, 4294901760
    %1509 = vmatpush.msra.mxu0 %v1508
    %v1510 = vand.u32 %v1196, 4294901760
    %1511 = vmatpush.msra.mxu0 %v1510
    %v1512 = vand.u32 %v1195, 4294901760
    %1513 = vmatpush.msra.mxu0 %v1512
    %v1514 = vand.u32 %v1194, 4294901760
    %1515 = vmatpush.msra.mxu0 %v1514
    %v1516 = vand.u32 %v1193, 4294901760
    %1517 = vmatpush.msra.mxu0 %v1516
    %v1518 = vand.u32 %v1192, 4294901760
    %1519 = vmatpush.msra.mxu0 %v1518
    %v1520 = vand.u32 %v1191, 4294901760
    %1521 = vmatpush.msra.mxu0 %v1520
    %v1522 = vand.u32 %v1190, 4294901760
    %1523 = vmatpush.msra.mxu0 %v1522
    %v1524 = vand.u32 %v1189, 4294901760
    %1525 = vmatpush.msra.mxu0 %v1524
    %v1526 = vand.u32 %v1188, 4294901760
    %1527 = vmatpush.msra.mxu0 %v1526
    %v1528 = vand.u32 %v1187, 4294901760
    %1529 = vmatpush.msra.mxu0 %v1528
    %v1530 = vand.u32 %v1186, 4294901760
    %1531 = vmatpush.msra.mxu0 %v1530
    %v1532 = vand.u32 %v1185, 4294901760
    %1533 = vmatpush.msra.mxu0 %v1532
    %v1534 = vand.u32 %v1184, 4294901760
    %1535 = vmatpush.msra.mxu0 %v1534
    %v1536 = vand.u32 %v842, 4294901760
    %1537 = vmatmul.f32.gmra.mxu0 %v1536
    %v1538 = vpop.f32.mrf.mxu0
    %v1539 = vadd.f32 %v1502, %v1538
    %1540 = vdwg.mxu0
    %v1541 = vmul.f32 %v1182, 0.0078125
    %v1542 = vmul.f32 %v1539, 0.0078125
    %v1543 = vmul.f32 %v1541, %v1541
    %v1544 = vsub.f32 %v1542, %v1543
    %v1545 = vadd.f32 %v1544, 1e-05
    %v1546 = vrsqrt.pop %v1545
    %v1547 = vmul.f32 %v1546, %v1545
    %v1548 = vmul.f32 %v1547, %v1546
    %v1549 = vmul.f32 0.5, %v1548
    %v1550 = vsub.f32 1.5, %v1549
    %v1551 = vmul.f32 %v1546, %v1550
    %vm1552 = vweird.f32 %v1545
    %vm1553 = vweird.f32 %v1546
    %vm1554 = vmor %vm1552, %vm1553
    %v1555 = vsel %vm1554, %v1546, %v1551
    %v1557 = vrot.slane %v1555, 7
    %v1559 = vmul.f32 %v1182, %v1557
    %s1560 = sld [smem:[#allocation2]]
    %v1561 = vstv %s1560
    %v1562 = vadd.f32 %v1559, %v1561
    %1563 = vst [vmem:[#allocation3 - $0x1] sm:$0x2] %v1562
    // Predicated region
    $region18: #{tpu_custom_call.1} parent=1 // pred_check
      _
    $region19: #{tpu_custom_call.1} parent=1 // pred_check_branch
      %1565 = sbr.rel (0) target = $region21
    $region20: #{tpu_custom_call.1} parent=1 // pred_region
      %1567 = vsyncadd [#allocation4], 0
      %s1569 = sshll.u32 [#allocation3], 4
      %s1570 = int_to_ptr.vmem [resolvable:$true] %s1569
      %s1571 = sshll.u32 %s4, 4
      %s1572 = int_to_ptr.hbm [resolvable:$true] %s1571
      %1574 = dma.vmem_to_hbm [thread:$0]  %s1570, 16, %s1572, [#allocation4]
    $region21: #{tpu_custom_call.1} parent=1 // pred_fallthru
      _
    // Predicated region
    $region22: #{tpu_custom_call.1} parent=1 // pred_check
      _
    $region23: #{tpu_custom_call.1} parent=1 // pred_check_branch
      %1576 = sbr.rel (0) target = $region25
    $region24: #{tpu_custom_call.1} parent=1 // pred_region
      %1578 = dma.done [#allocation4], 16
    $region25: #{tpu_custom_call.1} parent=1 // pred_fallthru
      _
    %1579 = vsyncpa [#allocation4], 1

</llo_original>
